<compile_context>
chip_gen: v7x
topology: tpu7x:2x2x1
jax: 0.10.0
libtpu: 0.0.40
codegen_flags: <defaults>
</compile_context>

<pallas_src>
import functools
import math

import jax
import jax.numpy as jnp
import numpy as np
from jax.experimental import pallas as pl
from jax.experimental.pallas import tpu as pltpu


def _mha_kernel(xq_ref, xkv_ref, qmask_ref, kvmask_ref,
                wq_ref, wkv_ref, wp_ref,
                attn_out_ref, attn_w_ref,
                k_scratch, v_scratch, ctx_scratch,
                *, n_heads, d_k, masked, q_tile, compute_dtype):
    cd = compute_dtype
    D = n_heads * d_k
    TQ = q_tile
    Lk = k_scratch.shape[0]
    qi = pl.program_id(1)

    # ---- K/V projection: once per batch element (q-tile 0), cached in VMEM. ----
    @pl.when(qi == 0)
    def _():
        kv = jnp.dot(xkv_ref[0].astype(cd), wkv_ref[...],
                     preferred_element_type=jnp.float32)          # (Lk, 2D) f32
        k_scratch[...] = kv[:, :D].astype(cd)
        v_scratch[...] = kv[:, D:].astype(cd)

    # ---- Q projection for this q tile; fold in 1/sqrt(d_k) once. ----
    scale = jnp.float32(d_k ** -0.5)
    q = jnp.dot(xq_ref[0].astype(cd), wq_ref[...],
                preferred_element_type=jnp.float32) * scale        # (TQ, D) f32
    q = q.astype(cd)
    k = k_scratch[...]
    v = v_scratch[...]

    # ---- combined mask, built once per grid step (hoisted out of head loop). ----
    mask = (qmask_ref[0] != 0) | (kvmask_ref[0] != 0)              # (TQ, Lk)
    if masked:
        # torch.tril causal mask (module assumes Lq == Lk); rows are global indices.
        row = qi * TQ + jax.lax.broadcasted_iota(jnp.int32, (TQ, Lk), 0)
        col = jax.lax.broadcasted_iota(jnp.int32, (TQ, Lk), 1)
        mask = mask | (col > row)
    neg_inf = jnp.float32(-jnp.inf)

    # Heads are few and static -> unrolled Python loop with static slices.
    for h in range(n_heads):
        lo = h * d_k
        qh = q[:, lo:lo + d_k]     # (TQ, d_k)
        kh = k[:, lo:lo + d_k]     # (Lk, d_k)
        vh = v[:, lo:lo + d_k]     # (Lk, d_k)

        # q @ k^T: contract last dims directly, no materialized transpose.
        s = jax.lax.dot_general(qh, kh, (((1,), (1,)), ((), ())),
                                preferred_element_type=jnp.float32)  # (TQ, Lk)
        s = jnp.where(mask, neg_inf, s)

        # softmax(-1) with torch semantics: a fully masked row yields NaN.
        m = jnp.max(s, axis=-1, keepdims=True)
        p = jnp.exp(s - m)
        w_inter = p / jnp.sum(p, axis=-1, keepdims=True)
        attn_w_ref[0, h] = w_inter                                   # attention_weights_inter

        w = jnp.where(jnp.isnan(w_inter), jnp.float32(0.0), w_inter)
        ctx_scratch[:, lo:lo + d_k] = jnp.dot(
            w.astype(cd), vh, preferred_element_type=jnp.float32)

    # ---- single full-width output projection per q tile. ----
    attn_out_ref[0] = jnp.dot(ctx_scratch[...].astype(cd), wp_ref[...],
                              preferred_element_type=jnp.float32
                              ).astype(attn_out_ref.dtype)


def _estimate_vmem_bytes(Lk, D, H, q_tile, cd):
    """Rough per-core VMEM footprint (double-buffered blocks + scratch + temps)."""
    cds = jnp.dtype(cd).itemsize
    f32 = 4
    n = 0
    n += 2 * q_tile * D * f32                  # xq tile block
    n += 2 * Lk * D * f32                      # xkv block
    n += 2 * (q_tile + Lk) * 4                 # padding-mask blocks
    n += 2 * 4 * D * D * cds                   # wq + fused wkv + wp blocks
    n += 2 * q_tile * D * f32                  # attention output block
    n += 2 * H * q_tile * Lk * f32             # attention-weights output block
    n += 2 * Lk * D * cds + q_tile * D * f32   # k/v caches + context scratch
    n += 8 * q_tile * Lk * f32                 # per-head score/exp temporaries
    return n


def multi_head_attention(source_query, source_key_value,
                         source_query_padding_mask, source_key_value_padding_mask,
                         wq_t, wk_t, wv_t, wp_t,
                         *, n_heads, masked, q_tile=None,
                         compute_dtype=jnp.float32):
    """Returns (attention, attention_weights_inter), matching the PyTorch module."""
    B, Lq, D = source_query.shape
    Lk = source_key_value.shape[1]
    assert D % n_heads == 0
    d_k = D // n_heads

    if q_tile is None:
        q_tile = Lq if Lq <= 128 else 128
    assert Lq % q_tile == 0, "Lq must be divisible by q_tile"
    assert q_tile == Lq or q_tile % 8 == 0, "q_tile must be a multiple of 8 (or == Lq)"
    nq = Lq // q_tile

    cd = compute_dtype
    # Weights are cast once on the host side (halves weight DMA when bf16);
    # activations stay in their input dtype and are cast inside the kernel.
    wq = wq_t.astype(cd)
    wkv = jnp.concatenate([wk_t, wv_t], axis=1).astype(cd)   # fused [Wk^T | Wv^T]: (D, 2D)
    wp = wp_t.astype(cd)

    qmask = source_query_padding_mask.astype(jnp.int32).reshape(B, Lq, 1)
    kvmask = source_key_value_padding_mask.astype(jnp.int32).reshape(B, 1, Lk)

    kernel = functools.partial(_mha_kernel, n_heads=n_heads, d_k=d_k,
                               masked=masked, q_tile=q_tile, compute_dtype=cd)

    out_shapes = (
        jax.ShapeDtypeStruct((B, Lq, D), jnp.float32),             # attention
        jax.ShapeDtypeStruct((B, n_heads, Lq, Lk), jnp.float32),   # attention_weights_inter
    )

    grid_spec = pltpu.PrefetchScalarGridSpec(
        num_scalar_prefetch=0,
        grid=(B, nq),
        in_specs=[
            pl.BlockSpec((1, q_tile, D), lambda b, qi: (b, qi, 0)),   # source_query tile
            pl.BlockSpec((1, Lk, D), lambda b, qi: (b, 0, 0)),        # full source_key_value
            pl.BlockSpec((1, q_tile, 1), lambda b, qi: (b, qi, 0)),   # query padding mask tile
            pl.BlockSpec((1, 1, Lk), lambda b, qi: (b, 0, 0)),        # key/value padding mask
            pl.BlockSpec((D, D), lambda b, qi: (0, 0)),               # Wq^T
            pl.BlockSpec((D, 2 * D), lambda b, qi: (0, 0)),           # fused [Wk^T | Wv^T]
            pl.BlockSpec((D, D), lambda b, qi: (0, 0)),               # Wproj^T
        ],
        out_specs=[
            pl.BlockSpec((1, q_tile, D), lambda b, qi: (b, qi, 0)),
            pl.BlockSpec((1, n_heads, q_tile, Lk), lambda b, qi: (b, 0, qi, 0)),
        ],
        scratch_shapes=[
            pltpu.VMEM((Lk, D), cd),               # K cache (per batch element)
            pltpu.VMEM((Lk, D), cd),               # V cache (per batch element)
            pltpu.VMEM((q_tile, D), jnp.float32),  # context, pre-projection
        ],
    )

    vmem_limit = int(min(max(2 * _estimate_vmem_bytes(Lk, D, n_heads, q_tile, cd),
                             16 * 2 ** 20), 64 * 2 ** 20))

    attn, attn_w = pl.pallas_call(
        kernel,
        grid_spec=grid_spec,
        out_shape=out_shapes,
        compiler_params=pltpu.CompilerParams(
            dimension_semantics=("parallel", "arbitrary"),
            vmem_limit_bytes=vmem_limit),
    )(source_query, source_key_value, qmask, kvmask, wq, wkv, wp)
    return attn, attn_w


def _reference(xq, xkv, qmask, kvmask, wq_t, wk_t, wv_t, wp_t,
               *, n_heads, masked, compute_dtype=jnp.float32):
    """Pure-JAX reference reproducing the PyTorch forward (dropout = identity),
    mirroring the kernel's compute-dtype casting so both paths are comparable."""
    cd = compute_dtype
    B, Lq, D = xq.shape
    Lk = xkv.shape[1]
    d_k = D // n_heads
    scale = jnp.float32(d_k ** -0.5)

    wq_c = wq_t.astype(cd)
    wkv_c = jnp.concatenate([wk_t, wv_t], axis=1).astype(cd)
    wp_c = wp_t.astype(cd)

    q = (jnp.dot(xq.astype(cd), wq_c, preferred_element_type=jnp.float32)
         * scale).astype(cd)
    kv = jnp.dot(xkv.astype(cd), wkv_c, preferred_element_type=jnp.float32)
    k = kv[..., :D].astype(cd)
    v = kv[..., D:].astype(cd)

    def split_heads(x):
        return x.reshape(B, -1, n_heads, d_k).transpose(0, 2, 1, 3)

    qh, kh, vh = split_heads(q), split_heads(k), split_heads(v)
    s = jnp.einsum("bhqd,bhkd->bhqk", qh, kh, preferred_element_type=jnp.float32)
    s = jnp.where(qmask[:, None, :, None], -jnp.inf, s)
    s = jnp.where(kvmask[:, None, None, :], -jnp.inf, s)
    if masked:
        row = jax.lax.broadcasted_iota(jnp.int32, (Lq, Lk), 0)
        col = jax.lax.broadcasted_iota(jnp.int32, (Lq, Lk), 1)
        s = jnp.where(col > row, -jnp.inf, s)
    m = jnp.max(s, axis=-1, keepdims=True)
    p = jnp.exp(s - m)
    w_inter = p / jnp.sum(p, axis=-1, keepdims=True)
    w = jnp.where(jnp.isnan(w_inter), 0.0, w_inter).astype(cd)
    ctx = jnp.einsum("bhqk,bhkd->bhqd", w, vh, preferred_element_type=jnp.float32)
    ctx = ctx.transpose(0, 2, 1, 3).reshape(B, Lq, D)
    attn = jnp.dot(ctx.astype(cd), wp_c, preferred_element_type=jnp.float32)
    return attn, w_inter


if __name__ == "__main__":
    B, L, D, H = 2, 16, 32, 4
    masked = True
    q_tile = 8     # exercises the q-tile grid axis (2 q tiles per batch element)

    key = jax.random.PRNGKey(0)
    k1, k2, k3, k4, k5, k6 = jax.random.split(key, 6)

    source_query = jax.random.normal(k1, (B, L, D), jnp.float32)
    source_key_value = jax.random.normal(k2, (B, L, D), jnp.float32)

    # deterministic "nn.Linear" weights (bias=False); stored pre-transposed (in, out)
    bound = 1.0 / math.sqrt(D)
    wq_t = jax.random.uniform(k3, (D, D), jnp.float32, -bound, bound)
    wk_t = jax.random.uniform(k4, (D, D), jnp.float32, -bound, bound)
    wv_t = jax.random.uniform(k5, (D, D), jnp.float32, -bound, bound)
    wp_t = jax.random.uniform(k6, (D, D), jnp.float32, -bound, bound)

    # padding masks (True = padded); batch 0 has fully padded query rows
    # (exercises the NaN softmax path), batch 1 has padded key/value positions.
    qmask = jnp.zeros((B, L), bool).at[0, -3:].set(True)
    kvmask = jnp.zeros((B, L), bool).at[1, -2:].set(True)

    # ---- f32 compute path (tight comparison against the f32 module semantics) ----
    attn, attn_w = multi_head_attention(
        source_query, source_key_value, qmask, kvmask,
        wq_t, wk_t, wv_t, wp_t, n_heads=H, masked=masked,
        q_tile=q_tile, compute_dtype=jnp.float32)
    jax.block_until_ready((attn, attn_w))

    ref_attn, ref_w = _reference(
        source_query, source_key_value, qmask, kvmask,
        wq_t, wk_t, wv_t, wp_t, n_heads=H, masked=masked,
        compute_dtype=jnp.float32)
    assert np.allclose(np.asarray(attn), np.asarray(ref_attn), atol=1e-4, rtol=1e-4)
    assert np.allclose(np.asarray(attn_w), np.asarray(ref_w),
                       atol=1e-4, rtol=1e-4, equal_nan=True)

    # ---- bf16 MXU path (bf16 operands, f32 accumulation, f32 softmax) ----
    attn16, attn_w16 = multi_head_attention(
        source_query, source_key_value, qmask, kvmask,
        wq_t, wk_t, wv_t, wp_t, n_heads=H, masked=masked,
        q_tile=q_tile, compute_dtype=jnp.bfloat16)
    jax.block_until_ready((attn16, attn_w16))

    ref_attn16, ref_w16 = _reference(
        source_query, source_key_value, qmask, kvmask,
        wq_t, wk_t, wv_t, wp_t, n_heads=H, masked=masked,
        compute_dtype=jnp.bfloat16)
    assert np.allclose(np.asarray(attn16), np.asarray(ref_attn16),
                       atol=2e-3, rtol=2e-2)
    assert np.allclose(np.asarray(attn_w16), np.asarray(ref_w16),
                       atol=2e-3, rtol=2e-2, equal_nan=True)

    print("KERNEL_OK")
</pallas_src>

<mosaic_0001>
module attributes {stable_mosaic.version = 11 : i64} {
  func.func @_mha_kernel(%arg0: i32, %arg1: i32, %arg2: memref<1x8x32xf32, #tpu.memory_space<vmem>>, %arg3: memref<1x16x32xf32, #tpu.memory_space<vmem>>, %arg4: memref<1x8x1xi32, #tpu.memory_space<vmem>>, %arg5: memref<1x1x16xi32, #tpu.memory_space<vmem>>, %arg6: memref<32x32xf32, #tpu.memory_space<vmem>>, %arg7: memref<32x64xf32, #tpu.memory_space<vmem>>, %arg8: memref<32x32xf32, #tpu.memory_space<vmem>>, %arg9: memref<1x8x32xf32, #tpu.memory_space<vmem>>, %arg10: memref<1x4x8x16xf32, #tpu.memory_space<vmem>>, %arg11: memref<16x32xf32, #tpu.memory_space<vmem>>, %arg12: memref<16x32xf32, #tpu.memory_space<vmem>>, %arg13: memref<8x32xf32, #tpu.memory_space<vmem>>) attributes {dimension_semantics = [#tpu.dimension_semantics<parallel>, #tpu.dimension_semantics<arbitrary>], iteration_bounds = array<i64: 2, 2>, scalar_prefetch = 0 : i64, scratch_operands = 3 : i64, tpu.core_type = #tpu.core_type<tc>, window_params = [{transform_indices = @transform_0, window_bounds = array<i64: 1, 8, 32>}, {transform_indices = @transform_1, window_bounds = array<i64: 1, 16, 32>}, {transform_indices = @transform_2, window_bounds = array<i64: 1, 8, 1>}, {transform_indices = @transform_3, window_bounds = array<i64: 1, 1, 16>}, {pipeline_mode = #tpu.pipeline_mode<synchronous>, transform_indices = @transform_4, window_bounds = array<i64: 32, 32>}, {pipeline_mode = #tpu.pipeline_mode<synchronous>, transform_indices = @transform_5, window_bounds = array<i64: 32, 64>}, {pipeline_mode = #tpu.pipeline_mode<synchronous>, transform_indices = @transform_6, window_bounds = array<i64: 32, 32>}, {transform_indices = @transform_7, window_bounds = array<i64: 1, 8, 32>}, {transform_indices = @transform_8, window_bounds = array<i64: 1, 4, 8, 16>}]} {
    %c0_i32 = arith.constant 0 : i32
    %0 = arith.cmpi eq, %arg1, %c0_i32 : i32
    %1 = arith.extui %0 : i1 to i32
    %c0_i32_0 = arith.constant 0 : i32
    %2 = arith.cmpi ne, %1, %c0_i32_0 : i32
    scf.if %2 {
      %c0_68 = arith.constant 0 : index
      %c0_69 = arith.constant 0 : index
      %c0_70 = arith.constant 0 : index
      %127 = vector.load %arg3[%c0_68, %c0_69, %c0_70] : memref<1x16x32xf32, #tpu.memory_space<vmem>>, vector<1x16x32xf32>
      %128 = vector.shape_cast %127 : vector<1x16x32xf32> to vector<16x32xf32>
      %c0_71 = arith.constant 0 : index
      %c0_72 = arith.constant 0 : index
      %129 = vector.load %arg7[%c0_71, %c0_72] : memref<32x64xf32, #tpu.memory_space<vmem>>, vector<32x64xf32>
      %cst_73 = arith.constant dense<0.000000e+00> : vector<16x64xf32>
      %130 = tpu.matmul %128, %129, %cst_73 {dimension_numbers = #tpu.dot_dimension_numbers<[1], [0], [0], [1], [0, 0, 1, 1], [], []>} : vector<16x32xf32>, vector<32x64xf32>, vector<16x64xf32> -> vector<16x64xf32>
      %131 = vector.extract_strided_slice %130 {offsets = [0, 0], sizes = [16, 32], strides = [1, 1]} : vector<16x64xf32> to vector<16x32xf32>
      %c0_74 = arith.constant 0 : index
      %c0_75 = arith.constant 0 : index
      %132 = vector.load %arg11[%c0_74, %c0_75] : memref<16x32xf32, #tpu.memory_space<vmem>>, vector<16x32xf32>
      tpu.vector_store %arg11[%c0_74, %c0_75], %131 {strides = array<i32>} : memref<16x32xf32, #tpu.memory_space<vmem>>, vector<16x32xf32>,
      %133 = vector.extract_strided_slice %130 {offsets = [0, 32], sizes = [16, 32], strides = [1, 1]} : vector<16x64xf32> to vector<16x32xf32>
      %c0_76 = arith.constant 0 : index
      %c0_77 = arith.constant 0 : index
      %134 = vector.load %arg12[%c0_76, %c0_77] : memref<16x32xf32, #tpu.memory_space<vmem>>, vector<16x32xf32>
      tpu.vector_store %arg12[%c0_76, %c0_77], %133 {strides = array<i32>} : memref<16x32xf32, #tpu.memory_space<vmem>>, vector<16x32xf32>,
    } else {
    }
    %c0 = arith.constant 0 : index
    %c0_1 = arith.constant 0 : index
    %c0_2 = arith.constant 0 : index
    %3 = vector.load %arg2[%c0, %c0_1, %c0_2] : memref<1x8x32xf32, #tpu.memory_space<vmem>>, vector<1x8x32xf32>
    %4 = vector.shape_cast %3 : vector<1x8x32xf32> to vector<8x32xf32>
    %c0_3 = arith.constant 0 : index
    %c0_4 = arith.constant 0 : index
    %5 = vector.load %arg6[%c0_3, %c0_4] : memref<32x32xf32, #tpu.memory_space<vmem>>, vector<32x32xf32>
    %cst = arith.constant dense<0.000000e+00> : vector<8x32xf32>
    %6 = tpu.matmul %4, %5, %cst {dimension_numbers = #tpu.dot_dimension_numbers<[1], [0], [0], [1], [0, 0, 1, 1], [], []>} : vector<8x32xf32>, vector<32x32xf32>, vector<8x32xf32> -> vector<8x32xf32>
    %cst_5 = arith.constant 0.353553385 : f32
    %7 = vector.broadcast %cst_5 : f32 to vector<8x32xf32>
    %8 = arith.mulf %6, %7 : vector<8x32xf32>
    %c0_6 = arith.constant 0 : index
    %c0_7 = arith.constant 0 : index
    %9 = vector.load %arg11[%c0_6, %c0_7] : memref<16x32xf32, #tpu.memory_space<vmem>>, vector<16x32xf32>
    %c0_8 = arith.constant 0 : index
    %c0_9 = arith.constant 0 : index
    %10 = vector.load %arg12[%c0_8, %c0_9] : memref<16x32xf32, #tpu.memory_space<vmem>>, vector<16x32xf32>
    %c0_10 = arith.constant 0 : index
    %c0_11 = arith.constant 0 : index
    %c0_12 = arith.constant 0 : index
    %11 = vector.load %arg4[%c0_10, %c0_11, %c0_12] : memref<1x8x1xi32, #tpu.memory_space<vmem>>, vector<1x8x1xi32>
    %12 = vector.shape_cast %11 : vector<1x8x1xi32> to vector<8x1xi32>
    %c0_i32_13 = arith.constant 0 : i32
    %13 = vector.broadcast %c0_i32_13 : i32 to vector<8x1xi32>
    %14 = arith.cmpi ne, %12, %13 : vector<8x1xi32>
    %c0_14 = arith.constant 0 : index
    %c0_15 = arith.constant 0 : index
    %c0_16 = arith.constant 0 : index
    %15 = vector.load %arg5[%c0_14, %c0_15, %c0_16] : memref<1x1x16xi32, #tpu.memory_space<vmem>>, vector<1x1x16xi32>
    %16 = vector.shape_cast %15 : vector<1x1x16xi32> to vector<1x16xi32>
    %c0_i32_17 = arith.constant 0 : i32
    %17 = vector.broadcast %c0_i32_17 : i32 to vector<1x16xi32>
    %18 = arith.cmpi ne, %16, %17 : vector<1x16xi32>
    %19 = vector.broadcast %14 : vector<8x1xi1> to vector<8x16xi1>
    %20 = vector.broadcast %18 : vector<1x16xi1> to vector<8x16xi1>
    %21 = arith.ori %19, %20 : vector<8x16xi1>
    %c8_i32 = arith.constant 8 : i32
    %22 = arith.muli %arg1, %c8_i32 : i32
    %23 = tpu.iota {dimensions = array<i32: 0>} : vector<8x16xi32>
    %24 = vector.broadcast %22 : i32 to vector<8x16xi32>
    %25 = arith.addi %24, %23 : vector<8x16xi32>
    %26 = tpu.iota {dimensions = array<i32: 1>} : vector<8x16xi32>
    %27 = arith.cmpi sgt, %26, %25 : vector<8x16xi32>
    %28 = arith.ori %21, %27 : vector<8x16xi1>
    %29 = vector.extract_strided_slice %8 {offsets = [0, 0], sizes = [8, 8], strides = [1, 1]} : vector<8x32xf32> to vector<8x8xf32>
    %30 = vector.extract_strided_slice %9 {offsets = [0, 0], sizes = [16, 8], strides = [1, 1]} : vector<16x32xf32> to vector<16x8xf32>
    %31 = vector.extract_strided_slice %10 {offsets = [0, 0], sizes = [16, 8], strides = [1, 1]} : vector<16x32xf32> to vector<16x8xf32>
    %cst_18 = arith.constant dense<0.000000e+00> : vector<8x16xf32>
    %32 = tpu.matmul %29, %30, %cst_18 {dimension_numbers = #tpu.dot_dimension_numbers<[1], [1], [0], [0], [0, 0, 1, 0], [], []>} : vector<8x8xf32>, vector<16x8xf32>, vector<8x16xf32> -> vector<8x16xf32>
    %cst_19 = arith.constant 0xFF800000 : f32
    %33 = vector.broadcast %cst_19 : f32 to vector<8x16xf32>
    %34 = arith.select %28, %33, %32 : vector<8x16xi1>, vector<8x16xf32>
    %cst_20 = arith.constant dense<0xFF800000> : vector<8xf32>
    %35 = vector.multi_reduction <maximumf>, %34, %cst_20 [1] : vector<8x16xf32> to vector<8xf32>
    %36 = vector.shape_cast %35 : vector<8xf32> to vector<8x1xf32>
    %37 = vector.broadcast %36 : vector<8x1xf32> to vector<8x16xf32>
    %38 = arith.subf %34, %37 : vector<8x16xf32>
    %39 = math.exp %38 : vector<8x16xf32>
    %cst_21 = arith.constant dense<0.000000e+00> : vector<8xf32>
    %40 = vector.multi_reduction <add>, %39, %cst_21 [1] : vector<8x16xf32> to vector<8xf32>
    %41 = vector.shape_cast %40 : vector<8xf32> to vector<8x1xf32>
    %42 = vector.broadcast %41 : vector<8x1xf32> to vector<8x16xf32>
    %43 = arith.divf %39, %42 : vector<8x16xf32>
    %c0_22 = arith.constant 0 : index
    %c0_23 = arith.constant 0 : index
    %c0_24 = arith.constant 0 : index
    %c0_25 = arith.constant 0 : index
    %44 = vector.load %arg10[%c0_22, %c0_23, %c0_24, %c0_25] : memref<1x4x8x16xf32, #tpu.memory_space<vmem>>, vector<1x1x8x16xf32>
    %45 = vector.shape_cast %44 : vector<1x1x8x16xf32> to vector<8x16xf32>
    %46 = vector.shape_cast %43 : vector<8x16xf32> to vector<1x1x8x16xf32>
    tpu.vector_store %arg10[%c0_22, %c0_23, %c0_24, %c0_25], %46 {strides = array<i32>} : memref<1x4x8x16xf32, #tpu.memory_space<vmem>>, vector<1x1x8x16xf32>,
    %47 = arith.cmpf one, %43, %43 : vector<8x16xf32>
    %cst_26 = arith.constant 0.000000e+00 : f32
    %48 = vector.broadcast %cst_26 : f32 to vector<8x16xf32>
    %49 = arith.select %47, %48, %43 : vector<8x16xi1>, vector<8x16xf32>
    %cst_27 = arith.constant dense<0.000000e+00> : vector<8x8xf32>
    %50 = tpu.matmul %49, %31, %cst_27 {dimension_numbers = #tpu.dot_dimension_numbers<[1], [0], [0], [1], [0, 0, 1, 1], [], []>} : vector<8x16xf32>, vector<16x8xf32>, vector<8x8xf32> -> vector<8x8xf32>
    %c0_28 = arith.constant 0 : index
    %c0_29 = arith.constant 0 : index
    %51 = vector.load %arg13[%c0_28, %c0_29] : memref<8x32xf32, #tpu.memory_space<vmem>>, vector<8x8xf32>
    tpu.vector_store %arg13[%c0_28, %c0_29], %50 {strides = array<i32>} : memref<8x32xf32, #tpu.memory_space<vmem>>, vector<8x8xf32>,
    %52 = vector.extract_strided_slice %8 {offsets = [0, 8], sizes = [8, 8], strides = [1, 1]} : vector<8x32xf32> to vector<8x8xf32>
    %53 = vector.extract_strided_slice %9 {offsets = [0, 8], sizes = [16, 8], strides = [1, 1]} : vector<16x32xf32> to vector<16x8xf32>
    %54 = vector.extract_strided_slice %10 {offsets = [0, 8], sizes = [16, 8], strides = [1, 1]} : vector<16x32xf32> to vector<16x8xf32>
    %cst_30 = arith.constant dense<0.000000e+00> : vector<8x16xf32>
    %55 = tpu.matmul %52, %53, %cst_30 {dimension_numbers = #tpu.dot_dimension_numbers<[1], [1], [0], [0], [0, 0, 1, 0], [], []>} : vector<8x8xf32>, vector<16x8xf32>, vector<8x16xf32> -> vector<8x16xf32>
    %cst_31 = arith.constant 0xFF800000 : f32
    %56 = vector.broadcast %cst_31 : f32 to vector<8x16xf32>
    %57 = arith.select %28, %56, %55 : vector<8x16xi1>, vector<8x16xf32>
    %cst_32 = arith.constant dense<0xFF800000> : vector<8xf32>
    %58 = vector.multi_reduction <maximumf>, %57, %cst_32 [1] : vector<8x16xf32> to vector<8xf32>
    %59 = vector.shape_cast %58 : vector<8xf32> to vector<8x1xf32>
    %60 = vector.broadcast %59 : vector<8x1xf32> to vector<8x16xf32>
    %61 = arith.subf %57, %60 : vector<8x16xf32>
    %62 = math.exp %61 : vector<8x16xf32>
    %cst_33 = arith.constant dense<0.000000e+00> : vector<8xf32>
    %63 = vector.multi_reduction <add>, %62, %cst_33 [1] : vector<8x16xf32> to vector<8xf32>
    %64 = vector.shape_cast %63 : vector<8xf32> to vector<8x1xf32>
    %65 = vector.broadcast %64 : vector<8x1xf32> to vector<8x16xf32>
    %66 = arith.divf %62, %65 : vector<8x16xf32>
    %c0_34 = arith.constant 0 : index
    %c1 = arith.constant 1 : index
    %c0_35 = arith.constant 0 : index
    %c0_36 = arith.constant 0 : index
    %67 = vector.load %arg10[%c0_34, %c1, %c0_35, %c0_36] : memref<1x4x8x16xf32, #tpu.memory_space<vmem>>, vector<1x1x8x16xf32>
    %68 = vector.shape_cast %67 : vector<1x1x8x16xf32> to vector<8x16xf32>
    %69 = vector.shape_cast %66 : vector<8x16xf32> to vector<1x1x8x16xf32>
    tpu.vector_store %arg10[%c0_34, %c1, %c0_35, %c0_36], %69 {strides = array<i32>} : memref<1x4x8x16xf32, #tpu.memory_space<vmem>>, vector<1x1x8x16xf32>,
    %70 = arith.cmpf one, %66, %66 : vector<8x16xf32>
    %cst_37 = arith.constant 0.000000e+00 : f32
    %71 = vector.broadcast %cst_37 : f32 to vector<8x16xf32>
    %72 = arith.select %70, %71, %66 : vector<8x16xi1>, vector<8x16xf32>
    %cst_38 = arith.constant dense<0.000000e+00> : vector<8x8xf32>
    %73 = tpu.matmul %72, %54, %cst_38 {dimension_numbers = #tpu.dot_dimension_numbers<[1], [0], [0], [1], [0, 0, 1, 1], [], []>} : vector<8x16xf32>, vector<16x8xf32>, vector<8x8xf32> -> vector<8x8xf32>
    %c0_39 = arith.constant 0 : index
    %c8 = arith.constant 8 : index
    %74 = vector.load %arg13[%c0_39, %c8] : memref<8x32xf32, #tpu.memory_space<vmem>>, vector<8x8xf32>
    tpu.vector_store %arg13[%c0_39, %c8], %73 {strides = array<i32>} : memref<8x32xf32, #tpu.memory_space<vmem>>, vector<8x8xf32>,
    %75 = vector.extract_strided_slice %8 {offsets = [0, 16], sizes = [8, 8], strides = [1, 1]} : vector<8x32xf32> to vector<8x8xf32>
    %76 = vector.extract_strided_slice %9 {offsets = [0, 16], sizes = [16, 8], strides = [1, 1]} : vector<16x32xf32> to vector<16x8xf32>
    %77 = vector.extract_strided_slice %10 {offsets = [0, 16], sizes = [16, 8], strides = [1, 1]} : vector<16x32xf32> to vector<16x8xf32>
    %cst_40 = arith.constant dense<0.000000e+00> : vector<8x16xf32>
    %78 = tpu.matmul %75, %76, %cst_40 {dimension_numbers = #tpu.dot_dimension_numbers<[1], [1], [0], [0], [0, 0, 1, 0], [], []>} : vector<8x8xf32>, vector<16x8xf32>, vector<8x16xf32> -> vector<8x16xf32>
    %cst_41 = arith.constant 0xFF800000 : f32
    %79 = vector.broadcast %cst_41 : f32 to vector<8x16xf32>
    %80 = arith.select %28, %79, %78 : vector<8x16xi1>, vector<8x16xf32>
    %cst_42 = arith.constant dense<0xFF800000> : vector<8xf32>
    %81 = vector.multi_reduction <maximumf>, %80, %cst_42 [1] : vector<8x16xf32> to vector<8xf32>
    %82 = vector.shape_cast %81 : vector<8xf32> to vector<8x1xf32>
    %83 = vector.broadcast %82 : vector<8x1xf32> to vector<8x16xf32>
    %84 = arith.subf %80, %83 : vector<8x16xf32>
    %85 = math.exp %84 : vector<8x16xf32>
    %cst_43 = arith.constant dense<0.000000e+00> : vector<8xf32>
    %86 = vector.multi_reduction <add>, %85, %cst_43 [1] : vector<8x16xf32> to vector<8xf32>
    %87 = vector.shape_cast %86 : vector<8xf32> to vector<8x1xf32>
    %88 = vector.broadcast %87 : vector<8x1xf32> to vector<8x16xf32>
    %89 = arith.divf %85, %88 : vector<8x16xf32>
    %c0_44 = arith.constant 0 : index
    %c2 = arith.constant 2 : index
    %c0_45 = arith.constant 0 : index
    %c0_46 = arith.constant 0 : index
    %90 = vector.load %arg10[%c0_44, %c2, %c0_45, %c0_46] : memref<1x4x8x16xf32, #tpu.memory_space<vmem>>, vector<1x1x8x16xf32>
    %91 = vector.shape_cast %90 : vector<1x1x8x16xf32> to vector<8x16xf32>
    %92 = vector.shape_cast %89 : vector<8x16xf32> to vector<1x1x8x16xf32>
    tpu.vector_store %arg10[%c0_44, %c2, %c0_45, %c0_46], %92 {strides = array<i32>} : memref<1x4x8x16xf32, #tpu.memory_space<vmem>>, vector<1x1x8x16xf32>,
    %93 = arith.cmpf one, %89, %89 : vector<8x16xf32>
    %cst_47 = arith.constant 0.000000e+00 : f32
    %94 = vector.broadcast %cst_47 : f32 to vector<8x16xf32>
    %95 = arith.select %93, %94, %89 : vector<8x16xi1>, vector<8x16xf32>
    %cst_48 = arith.constant dense<0.000000e+00> : vector<8x8xf32>
    %96 = tpu.matmul %95, %77, %cst_48 {dimension_numbers = #tpu.dot_dimension_numbers<[1], [0], [0], [1], [0, 0, 1, 1], [], []>} : vector<8x16xf32>, vector<16x8xf32>, vector<8x8xf32> -> vector<8x8xf32>
    %c0_49 = arith.constant 0 : index
    %c16 = arith.constant 16 : index
    %97 = vector.load %arg13[%c0_49, %c16] : memref<8x32xf32, #tpu.memory_space<vmem>>, vector<8x8xf32>
    tpu.vector_store %arg13[%c0_49, %c16], %96 {strides = array<i32>} : memref<8x32xf32, #tpu.memory_space<vmem>>, vector<8x8xf32>,
    %98 = vector.extract_strided_slice %8 {offsets = [0, 24], sizes = [8, 8], strides = [1, 1]} : vector<8x32xf32> to vector<8x8xf32>
    %99 = vector.extract_strided_slice %9 {offsets = [0, 24], sizes = [16, 8], strides = [1, 1]} : vector<16x32xf32> to vector<16x8xf32>
    %100 = vector.extract_strided_slice %10 {offsets = [0, 24], sizes = [16, 8], strides = [1, 1]} : vector<16x32xf32> to vector<16x8xf32>
    %cst_50 = arith.constant dense<0.000000e+00> : vector<8x16xf32>
    %101 = tpu.matmul %98, %99, %cst_50 {dimension_numbers = #tpu.dot_dimension_numbers<[1], [1], [0], [0], [0, 0, 1, 0], [], []>} : vector<8x8xf32>, vector<16x8xf32>, vector<8x16xf32> -> vector<8x16xf32>
    %cst_51 = arith.constant 0xFF800000 : f32
    %102 = vector.broadcast %cst_51 : f32 to vector<8x16xf32>
    %103 = arith.select %28, %102, %101 : vector<8x16xi1>, vector<8x16xf32>
    %cst_52 = arith.constant dense<0xFF800000> : vector<8xf32>
    %104 = vector.multi_reduction <maximumf>, %103, %cst_52 [1] : vector<8x16xf32> to vector<8xf32>
    %105 = vector.shape_cast %104 : vector<8xf32> to vector<8x1xf32>
    %106 = vector.broadcast %105 : vector<8x1xf32> to vector<8x16xf32>
    %107 = arith.subf %103, %106 : vector<8x16xf32>
    %108 = math.exp %107 : vector<8x16xf32>
    %cst_53 = arith.constant dense<0.000000e+00> : vector<8xf32>
    %109 = vector.multi_reduction <add>, %108, %cst_53 [1] : vector<8x16xf32> to vector<8xf32>
    %110 = vector.shape_cast %109 : vector<8xf32> to vector<8x1xf32>
    %111 = vector.broadcast %110 : vector<8x1xf32> to vector<8x16xf32>
    %112 = arith.divf %108, %111 : vector<8x16xf32>
    %c0_54 = arith.constant 0 : index
    %c3 = arith.constant 3 : index
    %c0_55 = arith.constant 0 : index
    %c0_56 = arith.constant 0 : index
    %113 = vector.load %arg10[%c0_54, %c3, %c0_55, %c0_56] : memref<1x4x8x16xf32, #tpu.memory_space<vmem>>, vector<1x1x8x16xf32>
    %114 = vector.shape_cast %113 : vector<1x1x8x16xf32> to vector<8x16xf32>
    %115 = vector.shape_cast %112 : vector<8x16xf32> to vector<1x1x8x16xf32>
    tpu.vector_store %arg10[%c0_54, %c3, %c0_55, %c0_56], %115 {strides = array<i32>} : memref<1x4x8x16xf32, #tpu.memory_space<vmem>>, vector<1x1x8x16xf32>,
    %116 = arith.cmpf one, %112, %112 : vector<8x16xf32>
    %cst_57 = arith.constant 0.000000e+00 : f32
    %117 = vector.broadcast %cst_57 : f32 to vector<8x16xf32>
    %118 = arith.select %116, %117, %112 : vector<8x16xi1>, vector<8x16xf32>
    %cst_58 = arith.constant dense<0.000000e+00> : vector<8x8xf32>
    %119 = tpu.matmul %118, %100, %cst_58 {dimension_numbers = #tpu.dot_dimension_numbers<[1], [0], [0], [1], [0, 0, 1, 1], [], []>} : vector<8x16xf32>, vector<16x8xf32>, vector<8x8xf32> -> vector<8x8xf32>
    %c0_59 = arith.constant 0 : index
    %c24 = arith.constant 24 : index
    %120 = vector.load %arg13[%c0_59, %c24] : memref<8x32xf32, #tpu.memory_space<vmem>>, vector<8x8xf32>
    tpu.vector_store %arg13[%c0_59, %c24], %119 {strides = array<i32>} : memref<8x32xf32, #tpu.memory_space<vmem>>, vector<8x8xf32>,
    %c0_60 = arith.constant 0 : index
    %c0_61 = arith.constant 0 : index
    %121 = vector.load %arg13[%c0_60, %c0_61] : memref<8x32xf32, #tpu.memory_space<vmem>>, vector<8x32xf32>
    %c0_62 = arith.constant 0 : index
    %c0_63 = arith.constant 0 : index
    %122 = vector.load %arg8[%c0_62, %c0_63] : memref<32x32xf32, #tpu.memory_space<vmem>>, vector<32x32xf32>
    %cst_64 = arith.constant dense<0.000000e+00> : vector<8x32xf32>
    %123 = tpu.matmul %121, %122, %cst_64 {dimension_numbers = #tpu.dot_dimension_numbers<[1], [0], [0], [1], [0, 0, 1, 1], [], []>} : vector<8x32xf32>, vector<32x32xf32>, vector<8x32xf32> -> vector<8x32xf32>
    %c0_65 = arith.constant 0 : index
    %c0_66 = arith.constant 0 : index
    %c0_67 = arith.constant 0 : index
    %124 = vector.load %arg9[%c0_65, %c0_66, %c0_67] : memref<1x8x32xf32, #tpu.memory_space<vmem>>, vector<1x8x32xf32>
    %125 = vector.shape_cast %124 : vector<1x8x32xf32> to vector<8x32xf32>
    %126 = vector.shape_cast %123 : vector<8x32xf32> to vector<1x8x32xf32>
    tpu.vector_store %arg9[%c0_65, %c0_66, %c0_67], %126 {strides = array<i32>} : memref<1x8x32xf32, #tpu.memory_space<vmem>>, vector<1x8x32xf32>,
    return
  }
  func.func @transform_0(%arg0: i32, %arg1: i32) -> (i32, i32, i32) {
    %c0_i32 = arith.constant 0 : i32
    %c0_i32_0 = arith.constant 0 : i32
    return %arg0, %arg1, %c0_i32 : i32, i32, i32
  }
  func.func @transform_1(%arg0: i32, %arg1: i32) -> (i32, i32, i32) {
    %c0_i32 = arith.constant 0 : i32
    %c0_i32_0 = arith.constant 0 : i32
    %c0_i32_1 = arith.constant 0 : i32
    return %arg0, %c0_i32, %c0_i32_0 : i32, i32, i32
  }
  func.func @transform_2(%arg0: i32, %arg1: i32) -> (i32, i32, i32) {
    %c0_i32 = arith.constant 0 : i32
    %c0_i32_0 = arith.constant 0 : i32
    return %arg0, %arg1, %c0_i32 : i32, i32, i32
  }
  func.func @transform_3(%arg0: i32, %arg1: i32) -> (i32, i32, i32) {
    %c0_i32 = arith.constant 0 : i32
    %c0_i32_0 = arith.constant 0 : i32
    %c0_i32_1 = arith.constant 0 : i32
    return %arg0, %c0_i32, %c0_i32_0 : i32, i32, i32
  }
  func.func @transform_4(%arg0: i32, %arg1: i32) -> (i32, i32) {
    %c0_i32 = arith.constant 0 : i32
    %c0_i32_0 = arith.constant 0 : i32
    %c0_i32_1 = arith.constant 0 : i32
    return %c0_i32, %c0_i32_0 : i32, i32
  }
  func.func @transform_5(%arg0: i32, %arg1: i32) -> (i32, i32) {
    %c0_i32 = arith.constant 0 : i32
    %c0_i32_0 = arith.constant 0 : i32
    %c0_i32_1 = arith.constant 0 : i32
    return %c0_i32, %c0_i32_0 : i32, i32
  }
  func.func @transform_6(%arg0: i32, %arg1: i32) -> (i32, i32) {
    %c0_i32 = arith.constant 0 : i32
    %c0_i32_0 = arith.constant 0 : i32
    %c0_i32_1 = arith.constant 0 : i32
    return %c0_i32, %c0_i32_0 : i32, i32
  }
  func.func @transform_7(%arg0: i32, %arg1: i32) -> (i32, i32, i32) {
    %c0_i32 = arith.constant 0 : i32
    %c0_i32_0 = arith.constant 0 : i32
    return %arg0, %arg1, %c0_i32 : i32, i32, i32
  }
  func.func @transform_8(%arg0: i32, %arg1: i32) -> (i32, i32, i32, i32) {
    %c0_i32 = arith.constant 0 : i32
    %c0_i32_0 = arith.constant 0 : i32
    %c0_i32_1 = arith.constant 0 : i32
    return %arg0, %c0_i32, %arg1, %c0_i32_0 : i32, i32, i32, i32
  }
}

</mosaic_0001>

<llo_original>
// kernel: tpu_custom_call.1
$region0: #{tpu_custom_call.1}
  #allocation0 [shape = 'u32[]', space=smem, size = 0x4, offset = 0x4, fixed_abs, tag = 'smem constant byte address 0x4 - core index']
  #allocation1 [shape = 'u32[144,128]{1,0:T(1,128)}', space=vmem, size = 0x12000, scoped, tag = 'internal scratch']
  #allocation2 [shape = 'f32[16,32]{1,0:T(8,128)}', space=vmem, size = 0x2000, scoped, tag = 'scratch operand']
  #allocation3 [shape = 'f32[16,32]{1,0:T(8,128)}', space=vmem, size = 0x2000, scoped, tag = 'scratch operand']
  #allocation4 [shape = 'f32[8,32]{1,0:T(8,128)}', space=vmem, size = 0x1000, scoped, tag = 'scratch operand']
  %s0 = inlined_call_operand.vmem [shape: f32[2,16,32], index: 0, kind: input, shape index: {}]
  %s1 = inlined_call_operand.hbm [shape: f32[2,16,32], index: 1, kind: input, shape index: {}]
  %s2 = inlined_call_operand.vmem [shape: s32[2,16,1], index: 2, kind: input, shape index: {}]
  %s3 = inlined_call_operand.vmem [shape: s32[2,1,16], index: 3, kind: input, shape index: {}]
  %s4 = inlined_call_operand.hbm [shape: f32[32,32], index: 4, kind: input, shape index: {}]
  %s5 = inlined_call_operand.hbm [shape: f32[32,64], index: 5, kind: input, shape index: {}]
  %s6 = inlined_call_operand.hbm [shape: f32[32,32], index: 6, kind: input, shape index: {}]
  %s7 = inlined_call_operand.hbm [shape: f32[2,16,32], index: 7, kind: output, shape index: {0}]
  %s8 = inlined_call_operand.hbm [shape: f32[2,4,16,16], index: 8, kind: output, shape index: {1}]
  %9 = xla_tuple %s7, %s8
  %s10 = sld [smem:[#allocation0]]
  $region89: #{tpu_custom_call.1} parent=0
    _
  %s12 = ssub.s32 1, %s10
  %s13 = scalar_select 0, %s12, %s10
  $region1: #{tpu_custom_call.1} parent=0
    #allocation5 [shape = 'u8[16384]{0}', space=vmem, size = 0x4000, scoped, tag = 'input window, operand 1']
    #allocation6 [shape = 's32[2]{0}', space=sflag, size = 0x8, scoped, tag = 'scoped memory for tpu_custom_call.1']
    #allocation7 [shape = 's32[2]{0}', space=sflag, size = 0x8, scoped, tag = 'scoped memory for tpu_custom_call.1']
    #allocation8 [shape = 'u8[16384]{0}', space=vmem, size = 0x4000, scoped, tag = 'input window, operand 4, single buffered']
    #allocation9 [shape = 's32[1]{0}', space=sflag, size = 0x4, scoped, tag = 'scoped memory for tpu_custom_call.1']
    #allocation10 [shape = 'u8[16384]{0}', space=vmem, size = 0x4000, scoped, tag = 'input window, operand 5, single buffered']
    #allocation11 [shape = 'u8[16384]{0}', space=vmem, size = 0x4000, scoped, tag = 'input window, operand 6, single buffered']
    #allocation12 [shape = 's32[1]{0}', space=sflag, size = 0x4, scoped, tag = 'scoped memory for tpu_custom_call.1']
    #allocation13 [shape = 'u8[8192]{0}', space=vmem, size = 0x2000, scoped, tag = 'output window, operand 0']
    #allocation14 [shape = 'u8[32768]{0}', space=vmem, size = 0x8000, scoped, tag = 'output window, operand 1']
    #allocation15 [shape = 's32[2]{0}', space=sflag, size = 0x8, scoped, tag = 'scoped memory for tpu_custom_call.1']
    %14 = vsyncpa [#allocation6], 0
    %s15 = scalar_lea.sflag [#allocation6], 1
    %16 = vsyncpa %s15, 0
    %17 = vsyncpa [#allocation9], 0
    %18 = vsyncpa [#allocation12], 0
    %19 = vsyncpa [#allocation7], 0
    %s20 = scalar_lea.sflag [#allocation7], 1
    %21 = vsyncpa %s20, 0
    %22 = vsyncpa [#allocation15], 0
    %s23 = scalar_lea.sflag [#allocation15], 1
    %24 = vsyncpa %s23, 0
    loop: start=0, step=1, limit=6
    $region2: #{tpu_custom_call.1} parent=1 // loop_pre_header
      _
    $region3: #{tpu_custom_call.1} parent=1 // loop_header
      %s26 = sphi 0, %s30
      %p27 = scmp.ge.s32.totalorder %s26, 6
      %s33 = sphi 0, %s45
      %s34 = sphi 0, %s41
      %s35 = sphi 0, %s33
      %s36 = sphi 0, %s34
      %s37 = sphi 0, %s35
      %s38 = sphi 0, %s36
      %s50 = sphi 0, %s52
      %s53 = sphi 0, %s50
      %s54 = sphi 0, %s53
      %s70 = sphi 0, %s54
      %s76 = sphi 0, %s78
      %s79 = sphi 0, %s76
      %s80 = sphi 0, %s79
      %s96 = sphi 0, %s80
      %s104 = sphi 0, %s106
      %s107 = sphi 0, %s104
      %s108 = sphi 0, %s107
      %s124 = sphi 0, %s108
      %s130 = sphi 0, %s132
      %s133 = sphi 0, %s130
      %s134 = sphi 0, %s133
      %s150 = sphi 0, %s134
      %s154 = sphi 0, %s154
      %s156 = sphi 0, %s154
      %s157 = sphi 0, %s156
      %s171 = sphi 0, %s157
      %s175 = sphi 0, %s175
      %s177 = sphi 0, %s175
      %s178 = sphi 0, %s177
      %s192 = sphi 0, %s178
      %s196 = sphi 0, %s196
      %s198 = sphi 0, %s196
      %s199 = sphi 0, %s198
      %s213 = sphi 0, %s199
      %s221 = sphi 0, %s223
      %s224 = sphi 0, %s221
      %s225 = sphi 0, %s224
      %s241 = sphi 0, %s225
      %s249 = sphi 0, %s251
      %s252 = sphi 0, %s249
      %s253 = sphi 0, %s252
      %s269 = sphi 0, %s253
    $region4: #{tpu_custom_call.1} parent=1 // loop_header_branch
      %29 = sbr.rel (%p27) target = $region8
    $region5: #{tpu_custom_call.1} parent=1 // loop_body
      %s31 = ssub.s32 %s26, 1
      %s32 = ssub.s32 %s26, 2
      %s39 = sadd.s32 1, %s34
      %p40 = scmp.ge.s32.totalorder %s39, 2
      %s41 = scalar_select %p40, 0, %s39
      %s42 = sadd.s32 1, %s33
      %s43 = scalar_select %p40, %s42, %s33
      %p44 = scmp.ge.s32.totalorder %s43, 2
      %s45 = scalar_select %p44, 0, %s43
      %s46 = ssub.s32 %s33, %s45
      %s47 = ssub.s32 %s34, %s41
      %s48 = sor.u32 %s46, %s47
      %p49 = scmp.eq.s32.totalorder %s48, 0
      %s51 = sadd.s32 %s50, 1
      %s52 = scalar_select %p49, %s50, %s51
      %p55 = pneg %p49
      %p56 = scmp.eq.s32.totalorder %s26, 3
      %p57 = por %p55, %p56
      %p58 = scmp.ne.s32.totalorder %s50, %s53
      %p59 = scmp.eq.s32.totalorder %s26, 0
      %p60 = por %p58, %p59
      %p61 = scmp.ne.s32.totalorder %s50, %s53
      %p62 = scmp.eq.s32.totalorder %s31, 3
      %p63 = por %p61, %p62
      %p64 = scmp.ne.s32.totalorder %s53, %s54
      %p65 = scmp.eq.s32.totalorder %s31, 0
      %p66 = por %p64, %p65
      %p67 = scmp.ne.s32.totalorder %s53, %s54
      %p68 = scmp.eq.s32.totalorder %s32, 3
      %p69 = por %p67, %p68
      %p71 = scmp.ne.s32.totalorder %s54, %s70
      %p72 = scmp.eq.s32.totalorder %s32, 0
      %p73 = por %p71, %p72
      %s74 = ssub.s32 %s33, %s45
      %p75 = scmp.eq.s32.totalorder %s74, 0
      %s77 = sadd.s32 %s76, 1
      %s78 = scalar_select %p75, %s76, %s77
      %p81 = pneg %p75
      %p82 = scmp.eq.s32.totalorder %s26, 3
      %p83 = por %p81, %p82
      %p84 = scmp.ne.s32.totalorder %s76, %s79
      %p85 = scmp.eq.s32.totalorder %s26, 0
      %p86 = por %p84, %p85
      %p87 = scmp.ne.s32.totalorder %s76, %s79
      %p88 = scmp.eq.s32.totalorder %s31, 3
      %p89 = por %p87, %p88
      %p90 = scmp.ne.s32.totalorder %s79, %s80
      %p91 = scmp.eq.s32.totalorder %s31, 0
      %p92 = por %p90, %p91
      %p93 = scmp.ne.s32.totalorder %s79, %s80
      %p94 = scmp.eq.s32.totalorder %s32, 3
      %p95 = por %p93, %p94
      %p97 = scmp.ne.s32.totalorder %s80, %s96
      %p98 = scmp.eq.s32.totalorder %s32, 0
      %p99 = por %p97, %p98
      %s100 = ssub.s32 %s33, %s45
      %s101 = ssub.s32 %s34, %s41
      %s102 = sor.u32 %s100, %s101
      %p103 = scmp.eq.s32.totalorder %s102, 0
      %s105 = sadd.s32 %s104, 1
      %s106 = scalar_select %p103, %s104, %s105
      %p109 = pneg %p103
      %p110 = scmp.eq.s32.totalorder %s26, 3
      %p111 = por %p109, %p110
      %p112 = scmp.ne.s32.totalorder %s104, %s107
      %p113 = scmp.eq.s32.totalorder %s26, 0
      %p114 = por %p112, %p113
      %p115 = scmp.ne.s32.totalorder %s104, %s107
      %p116 = scmp.eq.s32.totalorder %s31, 3
      %p117 = por %p115, %p116
      %p118 = scmp.ne.s32.totalorder %s107, %s108
      %p119 = scmp.eq.s32.totalorder %s31, 0
      %p120 = por %p118, %p119
      %p121 = scmp.ne.s32.totalorder %s107, %s108
      %p122 = scmp.eq.s32.totalorder %s32, 3
      %p123 = por %p121, %p122
      %p125 = scmp.ne.s32.totalorder %s108, %s124
      %p126 = scmp.eq.s32.totalorder %s32, 0
      %p127 = por %p125, %p126
      %s128 = ssub.s32 %s33, %s45
      %p129 = scmp.eq.s32.totalorder %s128, 0
      %s131 = sadd.s32 %s130, 1
      %s132 = scalar_select %p129, %s130, %s131
      %p135 = pneg %p129
      %p136 = scmp.eq.s32.totalorder %s26, 3
      %p137 = por %p135, %p136
      %p138 = scmp.ne.s32.totalorder %s130, %s133
      %p139 = scmp.eq.s32.totalorder %s26, 0
      %p140 = por %p138, %p139
      %p141 = scmp.ne.s32.totalorder %s130, %s133
      %p142 = scmp.eq.s32.totalorder %s31, 3
      %p143 = por %p141, %p142
      %p144 = scmp.ne.s32.totalorder %s133, %s134
      %p145 = scmp.eq.s32.totalorder %s31, 0
      %p146 = por %p144, %p145
      %p147 = scmp.ne.s32.totalorder %s133, %s134
      %p148 = scmp.eq.s32.totalorder %s32, 3
      %p149 = por %p147, %p148
      %p151 = scmp.ne.s32.totalorder %s134, %s150
      %p152 = scmp.eq.s32.totalorder %s32, 0
      %p153 = por %p151, %p152
      %s155 = sadd.s32 %s154, 1
      %p158 = scmp.eq.s32.totalorder %s26, 3
      %p159 = scmp.ne.s32.totalorder %s154, %s156
      %p160 = scmp.eq.s32.totalorder %s26, 0
      %p161 = por %p159, %p160
      %p162 = scmp.ne.s32.totalorder %s154, %s156
      %p163 = scmp.eq.s32.totalorder %s31, 3
      %p164 = por %p162, %p163
      %p165 = scmp.ne.s32.totalorder %s156, %s157
      %p166 = scmp.eq.s32.totalorder %s31, 0
      %p167 = por %p165, %p166
      %p168 = scmp.ne.s32.totalorder %s156, %s157
      %p169 = scmp.eq.s32.totalorder %s32, 3
      %p170 = por %p168, %p169
      %p172 = scmp.ne.s32.totalorder %s157, %s171
      %p173 = scmp.eq.s32.totalorder %s32, 0
      %p174 = por %p172, %p173
      %s176 = sadd.s32 %s175, 1
      %p179 = scmp.eq.s32.totalorder %s26, 3
      %p180 = scmp.ne.s32.totalorder %s175, %s177
      %p181 = scmp.eq.s32.totalorder %s26, 0
      %p182 = por %p180, %p181
      %p183 = scmp.ne.s32.totalorder %s175, %s177
      %p184 = scmp.eq.s32.totalorder %s31, 3
      %p185 = por %p183, %p184
      %p186 = scmp.ne.s32.totalorder %s177, %s178
      %p187 = scmp.eq.s32.totalorder %s31, 0
      %p188 = por %p186, %p187
      %p189 = scmp.ne.s32.totalorder %s177, %s178
      %p190 = scmp.eq.s32.totalorder %s32, 3
      %p191 = por %p189, %p190
      %p193 = scmp.ne.s32.totalorder %s178, %s192
      %p194 = scmp.eq.s32.totalorder %s32, 0
      %p195 = por %p193, %p194
      %s197 = sadd.s32 %s196, 1
      %p200 = scmp.eq.s32.totalorder %s26, 3
      %p201 = scmp.ne.s32.totalorder %s196, %s198
      %p202 = scmp.eq.s32.totalorder %s26, 0
      %p203 = por %p201, %p202
      %p204 = scmp.ne.s32.totalorder %s196, %s198
      %p205 = scmp.eq.s32.totalorder %s31, 3
      %p206 = por %p204, %p205
      %p207 = scmp.ne.s32.totalorder %s198, %s199
      %p208 = scmp.eq.s32.totalorder %s31, 0
      %p209 = por %p207, %p208
      %p210 = scmp.ne.s32.totalorder %s198, %s199
      %p211 = scmp.eq.s32.totalorder %s32, 3
      %p212 = por %p210, %p211
      %p214 = scmp.ne.s32.totalorder %s199, %s213
      %p215 = scmp.eq.s32.totalorder %s32, 0
      %p216 = por %p214, %p215
      %s217 = ssub.s32 %s33, %s45
      %s218 = ssub.s32 %s34, %s41
      %s219 = sor.u32 %s217, %s218
      %p220 = scmp.eq.s32.totalorder %s219, 0
      %s222 = sadd.s32 %s221, 1
      %s223 = scalar_select %p220, %s221, %s222
      %p226 = pneg %p220
      %p227 = scmp.eq.s32.totalorder %s26, 3
      %p228 = por %p226, %p227
      %p229 = scmp.ne.s32.totalorder %s221, %s224
      %p230 = scmp.eq.s32.totalorder %s26, 0
      %p231 = por %p229, %p230
      %p232 = scmp.ne.s32.totalorder %s221, %s224
      %p233 = scmp.eq.s32.totalorder %s31, 3
      %p234 = por %p232, %p233
      %p235 = scmp.ne.s32.totalorder %s224, %s225
      %p236 = scmp.eq.s32.totalorder %s31, 0
      %p237 = por %p235, %p236
      %p238 = scmp.ne.s32.totalorder %s224, %s225
      %p239 = scmp.eq.s32.totalorder %s32, 3
      %p240 = por %p238, %p239
      %p242 = scmp.ne.s32.totalorder %s225, %s241
      %p243 = scmp.eq.s32.totalorder %s32, 0
      %p244 = por %p242, %p243
      %s245 = ssub.s32 %s33, %s45
      %s246 = ssub.s32 %s34, %s41
      %s247 = sor.u32 %s245, %s246
      %p248 = scmp.eq.s32.totalorder %s247, 0
      %s250 = sadd.s32 %s249, 1
      %s251 = scalar_select %p248, %s249, %s250
      %p254 = pneg %p248
      %p255 = scmp.eq.s32.totalorder %s26, 3
      %p256 = por %p254, %p255
      %p257 = scmp.ne.s32.totalorder %s249, %s252
      %p258 = scmp.eq.s32.totalorder %s26, 0
      %p259 = por %p257, %p258
      %p260 = scmp.ne.s32.totalorder %s249, %s252
      %p261 = scmp.eq.s32.totalorder %s31, 3
      %p262 = por %p260, %p261
      %p263 = scmp.ne.s32.totalorder %s252, %s253
      %p264 = scmp.eq.s32.totalorder %s31, 0
      %p265 = por %p263, %p264
      %p266 = scmp.ne.s32.totalorder %s252, %s253
      %p267 = scmp.eq.s32.totalorder %s32, 3
      %p268 = por %p266, %p267
      %p270 = scmp.ne.s32.totalorder %s253, %s269
      %p271 = scmp.eq.s32.totalorder %s32, 0
      %p272 = por %p270, %p271
      %p273 = scmp.le.s32.totalorder 1, %s26
      %p274 = scmp.lt.s32.totalorder %s26, 5
      %p275 = pnand %p273, %p274
      %p276 = pneg %p275
      // Predicated region
      $region9: #{tpu_custom_call.1} parent=5 // pred_check
        _
      $region10: #{tpu_custom_call.1} parent=5 // pred_check_branch
        %278 = sbr.rel (%p275) target = $region12
      $region11: #{tpu_custom_call.1} parent=5 // pred_region
        %s279 = ssub.s32 %s26, 1
        // Predicated region
        $region13: #{tpu_custom_call.1} parent=11 // pred_check
          %p280 = pneg %p167
        $region14: #{tpu_custom_call.1} parent=11 // pred_check_branch
          %282 = sbr.rel (%p280) target = $region16
        $region15: #{tpu_custom_call.1} parent=11 // pred_region
          %s284 = ssub.s32 512, 512
          %285 = vsyncadd [#allocation9], %s284
          %s286 = sshll.u32 [#allocation8], 4
          %s287 = int_to_ptr.vmem [resolvable:$true] %s286
          %292 = dma.hbm_to_vmem [thread:$0]  %s4, 512, %s287, [#allocation9], 128, 128, 8
        $region16: #{tpu_custom_call.1} parent=11 // pred_fallthru
          _
        // Predicated region
        $region17: #{tpu_custom_call.1} parent=11 // pred_check
          %p293 = pneg %p188
        $region18: #{tpu_custom_call.1} parent=11 // pred_check_branch
          %295 = sbr.rel (%p293) target = $region20
        $region19: #{tpu_custom_call.1} parent=11 // pred_region
          %s297 = ssub.s32 512, 512
          %298 = vsyncadd [#allocation9], %s297
          %s299 = sshll.u32 [#allocation10], 4
          %s300 = int_to_ptr.vmem [resolvable:$true] %s299
          %305 = dma.hbm_to_vmem [thread:$0]  %s5, 512, %s300, [#allocation9], 128, 128, 8
        $region20: #{tpu_custom_call.1} parent=11 // pred_fallthru
          _
        // Predicated region
        $region21: #{tpu_custom_call.1} parent=11 // pred_check
          %p306 = pneg %p209
        $region22: #{tpu_custom_call.1} parent=11 // pred_check_branch
          %308 = sbr.rel (%p306) target = $region24
        $region23: #{tpu_custom_call.1} parent=11 // pred_region
          %s310 = ssub.s32 512, 512
          %311 = vsyncadd [#allocation12], %s310
          %s312 = sshll.u32 [#allocation11], 4
          %s313 = int_to_ptr.vmem [resolvable:$true] %s312
          %318 = dma.hbm_to_vmem [thread:$0]  %s6, 512, %s313, [#allocation12], 128, 128, 8
        $region24: #{tpu_custom_call.1} parent=11 // pred_fallthru
          _
      $region12: #{tpu_custom_call.1} parent=5 // pred_fallthru
        _
      %p319 = scmp.lt.s32.totalorder %s26, 4
      // Predicated region
      $region25: #{tpu_custom_call.1} parent=5 // pred_check
        %p320 = pneg %p319
      $region26: #{tpu_custom_call.1} parent=5 // pred_check_branch
        %322 = sbr.rel (%p320) target = $region28
      $region27: #{tpu_custom_call.1} parent=5 // pred_region
        // Predicated region
        $region29: #{tpu_custom_call.1} parent=27 // pred_check
          %p323 = pneg %p60
        $region30: #{tpu_custom_call.1} parent=27 // pred_check_branch
          %325 = sbr.rel (%p323) target = $region32
        $region31: #{tpu_custom_call.1} parent=27 // pred_region
          %p326 = scmp.lt.s32.totalorder %s33, 1
          %s327 = scalar_select %p326, %s33, 1
          %p328 = scmp.lt.s32.totalorder %s34, 1
          %s329 = scalar_select %p328, %s34, 1
          %s330 = smul.addr %s327, 2
          %s331 = sadd.s32 %s329, %s330
          %s332 = smul.addr %s331, 8
          %s333 = scalar_lea.vmem %s0, %s332
        $region32: #{tpu_custom_call.1} parent=27 // pred_fallthru
          _
        // Predicated region
        $region33: #{tpu_custom_call.1} parent=27 // pred_check
          %p334 = pneg %p86
        $region34: #{tpu_custom_call.1} parent=27 // pred_check_branch
          %336 = sbr.rel (%p334) target = $region36
        $region35: #{tpu_custom_call.1} parent=27 // pred_region
          %s337 = sand.u32 %s76, 1
          %s338 = scalar_lea.sflag [#allocation6], %s337
          %s339 = sand.u32 %s76, 1
          %s340 = smul.addr %s339, 16
          %s341 = scalar_lea.vmem [#allocation5], %s340
          %s343 = ssub.s32 256, 256
          %344 = vsyncadd %s338, %s343
          %s345 = smul.addr %s33, 2
          %s346 = smul.addr %s345, 128
          %s347 = scalar_lea.hbm %s1, %s346
          %s348 = sshll.u32 %s341, 4
          %s349 = int_to_ptr.vmem [resolvable:$true] %s348
          %354 = dma.hbm_to_vmem [thread:$0]  %s347, 256, %s349, %s338, 128, 128, 8
        $region36: #{tpu_custom_call.1} parent=27 // pred_fallthru
          _
        // Predicated region
        $region37: #{tpu_custom_call.1} parent=27 // pred_check
          %p355 = pneg %p114
        $region38: #{tpu_custom_call.1} parent=27 // pred_check_branch
          %357 = sbr.rel (%p355) target = $region40
        $region39: #{tpu_custom_call.1} parent=27 // pred_region
          %p358 = scmp.lt.s32.totalorder %s33, 1
          %s359 = scalar_select %p358, %s33, 1
          %p360 = scmp.lt.s32.totalorder %s34, 1
          %s361 = scalar_select %p360, %s34, 1
          %s362 = smul.addr %s359, 2
          %s363 = sadd.s32 %s361, %s362
          %s364 = smul.addr %s363, 8
          %s365 = scalar_lea.vmem %s2, %s364
        $region40: #{tpu_custom_call.1} parent=27 // pred_fallthru
          _
        // Predicated region
        $region41: #{tpu_custom_call.1} parent=27 // pred_check
          %p366 = pneg %p140
        $region42: #{tpu_custom_call.1} parent=27 // pred_check_branch
          %368 = sbr.rel (%p366) target = $region44
        $region43: #{tpu_custom_call.1} parent=27 // pred_region
          %p369 = scmp.lt.s32.totalorder %s33, 1
          %s370 = scalar_select %p369, %s33, 1
          %s371 = scalar_lea.vmem %s3, %s370
        $region44: #{tpu_custom_call.1} parent=27 // pred_fallthru
          _
      $region28: #{tpu_custom_call.1} parent=5 // pred_fallthru
        _
      %p372 = scmp.le.s32.totalorder 1, %s26
      %p373 = scmp.lt.s32.totalorder %s26, 5
      %p374 = pnand %p372, %p373
      %p375 = pneg %p374
      // Predicated region
      $region45: #{tpu_custom_call.1} parent=5 // pred_check
        _
      $region46: #{tpu_custom_call.1} parent=5 // pred_check_branch
        %377 = sbr.rel (%p374) target = $region48
      $region47: #{tpu_custom_call.1} parent=5 // pred_region
        %s378 = ssub.s32 %s26, 1
        %s379 = sand.u32 %s79, 1
        %s380 = scalar_lea.sflag [#allocation6], %s379
        %s381 = sand.u32 %s79, 1
        %s382 = smul.addr %s381, 16
        %s383 = scalar_lea.vmem [#allocation5], %s382
        // Predicated region
        $region49: #{tpu_custom_call.1} parent=47 // pred_check
          %p384 = pneg %p92
        $region50: #{tpu_custom_call.1} parent=47 // pred_check_branch
          %386 = sbr.rel (%p384) target = $region52
        $region51: #{tpu_custom_call.1} parent=47 // pred_region
          %387 = dma.done %s380, 256
        $region52: #{tpu_custom_call.1} parent=47 // pred_fallthru
          _
        // Predicated region
        $region53: #{tpu_custom_call.1} parent=47 // pred_check
          %p388 = pneg %p167
        $region54: #{tpu_custom_call.1} parent=47 // pred_check_branch
          %390 = sbr.rel (%p388) target = $region56
        $region55: #{tpu_custom_call.1} parent=47 // pred_region
          %391 = dma.done [#allocation9], 512
        $region56: #{tpu_custom_call.1} parent=47 // pred_fallthru
          _
        // Predicated region
        $region57: #{tpu_custom_call.1} parent=47 // pred_check
          %p392 = pneg %p188
        $region58: #{tpu_custom_call.1} parent=47 // pred_check_branch
          %394 = sbr.rel (%p392) target = $region60
        $region59: #{tpu_custom_call.1} parent=47 // pred_region
          %395 = dma.done [#allocation9], 512
        $region60: #{tpu_custom_call.1} parent=47 // pred_fallthru
          _
        // Predicated region
        $region61: #{tpu_custom_call.1} parent=47 // pred_check
          %p396 = pneg %p209
        $region62: #{tpu_custom_call.1} parent=47 // pred_check_branch
          %398 = sbr.rel (%p396) target = $region64
        $region63: #{tpu_custom_call.1} parent=47 // pred_region
          %399 = dma.done [#allocation12], 512
        $region64: #{tpu_custom_call.1} parent=47 // pred_fallthru
          _
        %p400 = scmp.lt.s32.totalorder %s35, 1
        %s401 = scalar_select %p400, %s35, 1
        %p402 = scmp.lt.s32.totalorder %s36, 1
        %s403 = scalar_select %p402, %s36, 1
        %s404 = smul.addr %s401, 2
        %s405 = sadd.s32 %s403, %s404
        %s406 = smul.addr %s405, 8
        %s407 = scalar_lea.vmem %s0, %s406
        %p408 = pneg %p66
        %p409 = pneg %p63
        %s410 = sand.u32 %s79, 1
        %s411 = scalar_lea.sflag [#allocation6], %s410
        %s412 = sand.u32 %s79, 1
        %s413 = smul.addr %s412, 16
        %s414 = scalar_lea.vmem [#allocation5], %s413
        %p415 = pneg %p92
        %p416 = pneg %p89
        %p417 = scmp.lt.s32.totalorder %s35, 1
        %s418 = scalar_select %p417, %s35, 1
        %p419 = scmp.lt.s32.totalorder %s36, 1
        %s420 = scalar_select %p419, %s36, 1
        %s421 = smul.addr %s418, 2
        %s422 = sadd.s32 %s420, %s421
        %s423 = smul.addr %s422, 8
        %s424 = scalar_lea.vmem %s2, %s423
        %p425 = pneg %p120
        %p426 = pneg %p117
        %p427 = scmp.lt.s32.totalorder %s35, 1
        %s428 = scalar_select %p427, %s35, 1
        %s429 = scalar_lea.vmem %s3, %s428
        %p430 = pneg %p146
        %p431 = pneg %p143
        %p432 = pneg %p167
        %p433 = pneg %p164
        %p434 = pneg %p188
        %p435 = pneg %p185
        %p436 = pneg %p209
        %p437 = pneg %p206
        %p438 = pneg %p237
        %p439 = pneg %p234
        %s440 = sand.u32 %s224, 1
        %s441 = scalar_lea.sflag [#allocation7], %s440
        %s442 = sand.u32 %s224, 1
        %s443 = smul.addr %s442, 8
        %s444 = scalar_lea.vmem [#allocation13], %s443
        %p445 = pneg %p265
        %p446 = pneg %p262
        %s447 = sand.u32 %s252, 1
        %s448 = scalar_lea.sflag [#allocation15], %s447
        %s449 = sand.u32 %s252, 1
        %s450 = smul.addr %s449, 32
        %s451 = scalar_lea.vmem [#allocation14], %s450
        %p452 = scmp.lt.s32.totalorder %s35, 1
        %s453 = scalar_select %p452, %s35, 1
        %p454 = scmp.lt.s32.totalorder %s36, 1
        %s455 = scalar_select %p454, %s36, 1
        %s456 = smul.addr %s453, 2
        %s457 = sadd.s32 %s455, %s456
        %s458 = smul.addr %s457, 8
        %s459 = scalar_lea.vmem %s0, %s458
        %p460 = scmp.lt.s32.totalorder %s35, 1
        %s461 = scalar_select %p460, %s35, 1
        %p462 = scmp.lt.s32.totalorder %s36, 1
        %s463 = scalar_select %p462, %s36, 1
        %s464 = smul.addr %s461, 2
        %s465 = sadd.s32 %s463, %s464
        %s466 = smul.addr %s465, 8
        %s467 = scalar_lea.vmem %s2, %s466
        %p468 = scmp.lt.s32.totalorder %s35, 1
        %s469 = scalar_select %p468, %s35, 1
        %s470 = scalar_lea.vmem %s3, %s469
        %p471 = scmp.eq.s32.totalorder %s36, 0
        // Predicated region
        $region65: #{tpu_custom_call.1} parent=47 // pred_check
          %p472 = pneg %p471
        $region66: #{tpu_custom_call.1} parent=47 // pred_check_branch
          %474 = sbr.rel (%p472) target = $region68
        $region67: #{tpu_custom_call.1} parent=47 // pred_region
          %v475 = vld [vmem:[%s383] sm:$0xff]
          %v476 = vld [vmem:[%s383 + $0x8] sm:$0xff]
          %v477 = vld [vmem:[#allocation10] sm:$0xff]
          %v478 = vld [vmem:[#allocation10 + $0x8] sm:$0xff]
          %v479 = vld [vmem:[#allocation10 + $0x10] sm:$0xff]
          %v480 = vld [vmem:[#allocation10 + $0x18] sm:$0xff]
          %vm481 = vcmask 261120
          %v483 = vsel %vm481, %v475, 0
          %v486 = vsel %vm481, %v476, 0
          %488 = vmatprep.subr.mxu0 0.0
          %489 = vmatpush1.msra.mxu0 %v477
          %490 = vmatprep.subr.mxu0 0.0
          %491 = vmatpush1.msra.mxu0 %v478
          %492 = vmatprep.subr.mxu0 0.0
          %493 = vmatpush1.msra.mxu0 %v479
          %494 = vmatprep.subr.mxu0 0.0
          %495 = vmatpush1.msra.mxu0 %v480
          %496 = vmatprep.subr.mxu0 0.0
          %497 = vmatpush1.msra.mxu0 0.0
          %498 = vmatprep.subr.mxu0 0.0
          %499 = vmatpush1.msra.mxu0 0.0
          %500 = vmatprep.subr.mxu0 0.0
          %501 = vmatpush1.msra.mxu0 0.0
          %502 = vmatprep.subr.mxu0 0.0
          %503 = vmatpush1.msra.mxu0 0.0
          %504 = vmatprep.subr.mxu0 0.0
          %505 = vmatpush1.msra.mxu0 0.0
          %506 = vmatprep.subr.mxu0 0.0
          %507 = vmatpush1.msra.mxu0 0.0
          %508 = vmatprep.subr.mxu0 0.0
          %509 = vmatpush1.msra.mxu0 0.0
          %510 = vmatprep.subr.mxu0 0.0
          %511 = vmatpush1.msra.mxu0 0.0
          %512 = vmatprep.subr.mxu0 0.0
          %513 = vmatpush1.msra.mxu0 0.0
          %514 = vmatprep.subr.mxu0 0.0
          %515 = vmatpush1.msra.mxu0 0.0
          %516 = vmatprep.subr.mxu0 0.0
          %517 = vmatpush1.msra.mxu0 0.0
          %518 = vmatprep.subr.mxu0 0.0
          %519 = vmatpush1.msra.mxu0 0.0
          %520 = vmatprep.subr.mxu0 0.0
          %521 = vmatpush1.msra.mxu0 0.0
          %522 = vmatprep.subr.mxu0 0.0
          %523 = vmatpush1.msra.mxu0 0.0
          %524 = vmatprep.subr.mxu0 0.0
          %525 = vmatpush1.msra.mxu0 0.0
          %526 = vmatprep.subr.mxu0 0.0
          %527 = vmatpush1.msra.mxu0 0.0
          %528 = vmatprep.subr.mxu0 0.0
          %529 = vmatpush1.msra.mxu0 0.0
          %530 = vmatprep.subr.mxu0 0.0
          %531 = vmatpush1.msra.mxu0 0.0
          %532 = vmatprep.subr.mxu0 0.0
          %533 = vmatpush1.msra.mxu0 0.0
          %534 = vmatprep.subr.mxu0 0.0
          %535 = vmatpush1.msra.mxu0 0.0
          %536 = vmatprep.subr.mxu0 0.0
          %537 = vmatpush1.msra.mxu0 0.0
          %538 = vmatprep.subr.mxu0 0.0
          %539 = vmatpush1.msra.mxu0 0.0
          %540 = vmatprep.subr.mxu0 0.0
          %541 = vmatpush1.msra.mxu0 0.0
          %542 = vmatprep.subr.mxu0 0.0
          %543 = vmatpush1.msra.mxu0 0.0
          %544 = vmatprep.subr.mxu0 0.0
          %545 = vmatpush1.msra.mxu0 0.0
          %546 = vmatprep.subr.mxu0 0.0
          %547 = vmatpush1.msra.mxu0 0.0
          %548 = vmatprep.subr.mxu0 0.0
          %549 = vmatpush1.msra.mxu0 0.0
          %550 = vmatprep.subr.mxu0 0.0
          %551 = vmatpush1.msra.mxu0 0.0
          %552 = vmatprep.mubr.f32.mxu0 0.0
          %553 = vmatmul.mubr.f32.gmra.mrb[0].mxu0 %v483
          %v554 = vpop.f32.mrb[0].mxu0
          %v555 = vadd.f32 0.0, %v554
          %v556 = vpop.f32.mrb[0].mxu0
          %557 = vmatprep.mubr.f32.mxu0 0.0
          %558 = vmatmul.mubr.f32.gmra.mrb[0].mxu0 %v486
          %v559 = vpop.f32.mrb[0].mxu0
          %v560 = vadd.f32 0.0, %v559
          %v561 = vpop.f32.mrb[0].mxu0
          %562 = vdwg.mxu0
          %563 = vst.msk [vmem:[#allocation2] sm:$0xff] %vm481, %v555
          %564 = vst.msk [vmem:[#allocation2 + $0x8] sm:$0xff] %vm481, %v560
          %567 = vrot.lane.b32.xlu0 %v555, 96
          %v568 = vpop.permute.xlu0 %567
          %569 = vrot.lane.b32.xlu0 %v560, 96
          %v570 = vpop.permute.xlu0 %569
          %573 = vst.msk [vmem:[#allocation3] sm:$0xff] %vm481, %v568
          %574 = vst.msk [vmem:[#allocation3 + $0x8] sm:$0xff] %vm481, %v570
        $region68: #{tpu_custom_call.1} parent=47 // pred_fallthru
          _
        %v575 = vld [vmem:[%s459] sm:$0xff]
        %v576 = vld [vmem:[#allocation8] sm:$0xff]
        %v577 = vld [vmem:[#allocation8 + $0x8] sm:$0xff]
        %v578 = vld [vmem:[#allocation8 + $0x10] sm:$0xff]
        %v579 = vld [vmem:[#allocation8 + $0x18] sm:$0xff]
        %vm580 = vcmask 261120
        %v582 = vsel %vm580, %v575, 0
        %584 = vmatprep.subr.mxu0 0.0
        %585 = vmatpush1.msra.mxu0 %v576
        %586 = vmatprep.subr.mxu0 0.0
        %587 = vmatpush1.msra.mxu0 %v577
        %588 = vmatprep.subr.mxu0 0.0
        %589 = vmatpush1.msra.mxu0 %v578
        %590 = vmatprep.subr.mxu0 0.0
        %591 = vmatpush1.msra.mxu0 %v579
        %592 = vmatprep.subr.mxu0 0.0
        %593 = vmatpush1.msra.mxu0 0.0
        %594 = vmatprep.subr.mxu0 0.0
        %595 = vmatpush1.msra.mxu0 0.0
        %596 = vmatprep.subr.mxu0 0.0
        %597 = vmatpush1.msra.mxu0 0.0
        %598 = vmatprep.subr.mxu0 0.0
        %599 = vmatpush1.msra.mxu0 0.0
        %600 = vmatprep.subr.mxu0 0.0
        %601 = vmatpush1.msra.mxu0 0.0
        %602 = vmatprep.subr.mxu0 0.0
        %603 = vmatpush1.msra.mxu0 0.0
        %604 = vmatprep.subr.mxu0 0.0
        %605 = vmatpush1.msra.mxu0 0.0
        %606 = vmatprep.subr.mxu0 0.0
        %607 = vmatpush1.msra.mxu0 0.0
        %608 = vmatprep.subr.mxu0 0.0
        %609 = vmatpush1.msra.mxu0 0.0
        %610 = vmatprep.subr.mxu0 0.0
        %611 = vmatpush1.msra.mxu0 0.0
        %612 = vmatprep.subr.mxu0 0.0
        %613 = vmatpush1.msra.mxu0 0.0
        %614 = vmatprep.subr.mxu0 0.0
        %615 = vmatpush1.msra.mxu0 0.0
        %616 = vmatprep.subr.mxu0 0.0
        %617 = vmatpush1.msra.mxu0 0.0
        %618 = vmatprep.subr.mxu0 0.0
        %619 = vmatpush1.msra.mxu0 0.0
        %620 = vmatprep.subr.mxu0 0.0
        %621 = vmatpush1.msra.mxu0 0.0
        %622 = vmatprep.subr.mxu0 0.0
        %623 = vmatpush1.msra.mxu0 0.0
        %624 = vmatprep.subr.mxu0 0.0
        %625 = vmatpush1.msra.mxu0 0.0
        %626 = vmatprep.subr.mxu0 0.0
        %627 = vmatpush1.msra.mxu0 0.0
        %628 = vmatprep.subr.mxu0 0.0
        %629 = vmatpush1.msra.mxu0 0.0
        %630 = vmatprep.subr.mxu0 0.0
        %631 = vmatpush1.msra.mxu0 0.0
        %632 = vmatprep.subr.mxu0 0.0
        %633 = vmatpush1.msra.mxu0 0.0
        %634 = vmatprep.subr.mxu0 0.0
        %635 = vmatpush1.msra.mxu0 0.0
        %636 = vmatprep.subr.mxu0 0.0
        %637 = vmatpush1.msra.mxu0 0.0
        %638 = vmatprep.subr.mxu0 0.0
        %639 = vmatpush1.msra.mxu0 0.0
        %640 = vmatprep.subr.mxu0 0.0
        %641 = vmatpush1.msra.mxu0 0.0
        %642 = vmatprep.subr.mxu0 0.0
        %643 = vmatpush1.msra.mxu0 0.0
        %644 = vmatprep.subr.mxu0 0.0
        %645 = vmatpush1.msra.mxu0 0.0
        %646 = vmatprep.subr.mxu0 0.0
        %647 = vmatpush1.msra.mxu0 0.0
        %648 = vmatprep.mubr.f32.mxu0 0.0
        %649 = vmatmul.mubr.f32.gmra.mrb[0].mxu0 %v582
        %v650 = vpop.f32.mrb[0].mxu0
        %v651 = vadd.f32 0.0, %v650
        %v652 = vpop.f32.mrb[0].mxu0
        %653 = vdwg.mxu0
        %v654 = vmul.f32 %v651, 0.35355338
        %v655 = vld [vmem:[#allocation2] sm:$0xff]
        %v656 = vld [vmem:[#allocation2 + $0x8] sm:$0xff]
        %v657 = vld [vmem:[#allocation3] sm:$0xff]
        %v658 = vld [vmem:[#allocation3 + $0x8] sm:$0xff]
        %v659 = vld [vmem:[%s467] sm:$0xff]
        %vm660 = vcmp.ne.s32.totalorder %v659, 0
        %v661 = vld [vmem:[%s470] sm:$0x1]
        %vm662 = vcmp.ne.s32.totalorder %v661, 0
        %v663 = vsel %vm660, 1, 0
        %664 = vset.pattern.permute.xlu0 0
        %665 = vperm.xlu0 %664, %v663
        %v666 = vpop.permute.xlu0 %665
        %vm667 = vcmp.eq.s32.totalorder %v666, 1
        %v668 = vsel %vm662, 1, 0
        %v669 = vlaneseq
        %v670 = vshrl.u32 %v669, 7
        %v671 = vsub.s32 0, %v670
        %v672 = vrot.slane %v668, %v671
        %vm673 = vcmp.eq.s32.totalorder %v672, 1
        %vm674 = vmor %vm667, %vm673
        %s675 = smul.u32 %s36, 8
        %v676 = vlaneseq
        %v677 = vshrl.u32 %v676, 7
        %v678 = vstv %s675
        %v679 = vadd.s32 %v678, %v677
        %v680 = vlaneseq
        %v681 = vand.u32 %v680, 127
        %vm682 = vcmp.gt.s32.totalorder %v681, %v679
        %vm683 = vmor %vm674, %vm682
        %vm684 = vcmask 64512
        %v686 = vsel %vm684, %v654, 0
        %v689 = vsel %vm684, %v655, 0
        %v692 = vsel %vm684, %v656, 0
        %694 = vmatprep.subr.mxu0 0.0
        %695 = vmatpush1.xpose.msra.mxu0 %v689
        %696 = vmatprep.subr.mxu0 0.0
        %697 = vmatpush1.xpose.msra.mxu0 %v692
        %698 = vmatprep.subr.mxu0 0.0
        %699 = vmatpush1.xpose.msra.mxu0 0.0
        %700 = vmatprep.subr.mxu0 0.0
        %701 = vmatpush1.xpose.msra.mxu0 0.0
        %702 = vmatprep.subr.mxu0 0.0
        %703 = vmatpush1.xpose.msra.mxu0 0.0
        %704 = vmatprep.subr.mxu0 0.0
        %705 = vmatpush1.xpose.msra.mxu0 0.0
        %706 = vmatprep.subr.mxu0 0.0
        %707 = vmatpush1.xpose.msra.mxu0 0.0
        %708 = vmatprep.subr.mxu0 0.0
        %709 = vmatpush1.xpose.msra.mxu0 0.0
        %710 = vmatprep.subr.mxu0 0.0
        %711 = vmatpush1.xpose.msra.mxu0 0.0
        %712 = vmatprep.subr.mxu0 0.0
        %713 = vmatpush1.xpose.msra.mxu0 0.0
        %714 = vmatprep.subr.mxu0 0.0
        %715 = vmatpush1.xpose.msra.mxu0 0.0
        %716 = vmatprep.subr.mxu0 0.0
        %717 = vmatpush1.xpose.msra.mxu0 0.0
        %718 = vmatprep.subr.mxu0 0.0
        %719 = vmatpush1.xpose.msra.mxu0 0.0
        %720 = vmatprep.subr.mxu0 0.0
        %721 = vmatpush1.xpose.msra.mxu0 0.0
        %722 = vmatprep.subr.mxu0 0.0
        %723 = vmatpush1.xpose.msra.mxu0 0.0
        %724 = vmatprep.subr.mxu0 0.0
        %725 = vmatpush1.xpose.msra.mxu0 0.0
        %726 = vmatprep.subr.mxu0 0.0
        %727 = vmatpush1.xpose.msra.mxu0 0.0
        %728 = vmatprep.subr.mxu0 0.0
        %729 = vmatpush1.xpose.msra.mxu0 0.0
        %730 = vmatprep.subr.mxu0 0.0
        %731 = vmatpush1.xpose.msra.mxu0 0.0
        %732 = vmatprep.subr.mxu0 0.0
        %733 = vmatpush1.xpose.msra.mxu0 0.0
        %734 = vmatprep.subr.mxu0 0.0
        %735 = vmatpush1.xpose.msra.mxu0 0.0
        %736 = vmatprep.subr.mxu0 0.0
        %737 = vmatpush1.xpose.msra.mxu0 0.0
        %738 = vmatprep.subr.mxu0 0.0
        %739 = vmatpush1.xpose.msra.mxu0 0.0
        %740 = vmatprep.subr.mxu0 0.0
        %741 = vmatpush1.xpose.msra.mxu0 0.0
        %742 = vmatprep.subr.mxu0 0.0
        %743 = vmatpush1.xpose.msra.mxu0 0.0
        %744 = vmatprep.subr.mxu0 0.0
        %745 = vmatpush1.xpose.msra.mxu0 0.0
        %746 = vmatprep.subr.mxu0 0.0
        %747 = vmatpush1.xpose.msra.mxu0 0.0
        %748 = vmatprep.subr.mxu0 0.0
        %749 = vmatpush1.xpose.msra.mxu0 0.0
        %750 = vmatprep.subr.mxu0 0.0
        %751 = vmatpush1.xpose.msra.mxu0 0.0
        %752 = vmatprep.subr.mxu0 0.0
        %753 = vmatpush1.xpose.msra.mxu0 0.0
        %754 = vmatprep.subr.mxu0 0.0
        %755 = vmatpush1.xpose.msra.mxu0 0.0
        %756 = vmatprep.subr.mxu0 0.0
        %757 = vmatpush1.xpose.msra.mxu0 0.0
        %758 = vmatprep.mubr.f32.mxu0 0.0
        %759 = vmatmul.mubr.f32.gmra.mrb[0].mxu0 %v686
        %v760 = vpop.f32.mrb[0].mxu0
        %v761 = vadd.f32 0.0, %v760
        %v762 = vpop.f32.mrb[0].mxu0
        %763 = vdwg.mxu0
        %v764 = vsel %vm683, -inf, %v761
        %vm765 = vcmask 130048
        %v766 = vsel %vm765, %v764, -inf
        %767 = vmax.xlane.f32.xlu0 %v766
        %v768 = vpop.xlane.xlu0 %767
        %v769 = vsub.f32 %v764, %v768
        %v770 = vmul.f32 %v769, 1.442695
        %v771 = vpow.pop %v770
        %v772 = vsel %vm765, %v771, 0.0
        %773 = vadd.xlane.f32.xlu0 %v772
        %v774 = vpop.xlane.xlu0 %773
        %v775 = vrcp.pop %v774
        %v776 = vmul.f32 %v771, %v775
        %777 = vst.msk [vmem:[%s451] sm:$0xff] %vm765, %v776
        %vm778 = vcmp.ne.f32.partialorder %v776, %v776
        %v779 = vsel %vm778, 0.0, %v776
        %v781 = vsel %vm765, %v779, 0
        %783 = vmatprep.subr.mxu0 0.0
        %784 = vmatpush1.msra.mxu0 %v657
        %785 = vmatprep.subr.mxu0 0.0
        %786 = vmatpush1.msra.mxu0 %v658
        %787 = vmatprep.subr.mxu0 0.0
        %788 = vmatpush1.msra.mxu0 0.0
        %789 = vmatprep.subr.mxu0 0.0
        %790 = vmatpush1.msra.mxu0 0.0
        %791 = vmatprep.subr.mxu0 0.0
        %792 = vmatpush1.msra.mxu0 0.0
        %793 = vmatprep.subr.mxu0 0.0
        %794 = vmatpush1.msra.mxu0 0.0
        %795 = vmatprep.subr.mxu0 0.0
        %796 = vmatpush1.msra.mxu0 0.0
        %797 = vmatprep.subr.mxu0 0.0
        %798 = vmatpush1.msra.mxu0 0.0
        %799 = vmatprep.subr.mxu0 0.0
        %800 = vmatpush1.msra.mxu0 0.0
        %801 = vmatprep.subr.mxu0 0.0
        %802 = vmatpush1.msra.mxu0 0.0
        %803 = vmatprep.subr.mxu0 0.0
        %804 = vmatpush1.msra.mxu0 0.0
        %805 = vmatprep.subr.mxu0 0.0
        %806 = vmatpush1.msra.mxu0 0.0
        %807 = vmatprep.subr.mxu0 0.0
        %808 = vmatpush1.msra.mxu0 0.0
        %809 = vmatprep.subr.mxu0 0.0
        %810 = vmatpush1.msra.mxu0 0.0
        %811 = vmatprep.subr.mxu0 0.0
        %812 = vmatpush1.msra.mxu0 0.0
        %813 = vmatprep.subr.mxu0 0.0
        %814 = vmatpush1.msra.mxu0 0.0
        %815 = vmatprep.subr.mxu0 0.0
        %816 = vmatpush1.msra.mxu0 0.0
        %817 = vmatprep.subr.mxu0 0.0
        %818 = vmatpush1.msra.mxu0 0.0
        %819 = vmatprep.subr.mxu0 0.0
        %820 = vmatpush1.msra.mxu0 0.0
        %821 = vmatprep.subr.mxu0 0.0
        %822 = vmatpush1.msra.mxu0 0.0
        %823 = vmatprep.subr.mxu0 0.0
        %824 = vmatpush1.msra.mxu0 0.0
        %825 = vmatprep.subr.mxu0 0.0
        %826 = vmatpush1.msra.mxu0 0.0
        %827 = vmatprep.subr.mxu0 0.0
        %828 = vmatpush1.msra.mxu0 0.0
        %829 = vmatprep.subr.mxu0 0.0
        %830 = vmatpush1.msra.mxu0 0.0
        %831 = vmatprep.subr.mxu0 0.0
        %832 = vmatpush1.msra.mxu0 0.0
        %833 = vmatprep.subr.mxu0 0.0
        %834 = vmatpush1.msra.mxu0 0.0
        %835 = vmatprep.subr.mxu0 0.0
        %836 = vmatpush1.msra.mxu0 0.0
        %837 = vmatprep.subr.mxu0 0.0
        %838 = vmatpush1.msra.mxu0 0.0
        %839 = vmatprep.subr.mxu0 0.0
        %840 = vmatpush1.msra.mxu0 0.0
        %841 = vmatprep.subr.mxu0 0.0
        %842 = vmatpush1.msra.mxu0 0.0
        %843 = vmatprep.subr.mxu0 0.0
        %844 = vmatpush1.msra.mxu0 0.0
        %845 = vmatprep.subr.mxu0 0.0
        %846 = vmatpush1.msra.mxu0 0.0
        %847 = vmatprep.mubr.f32.mxu0 0.0
        %848 = vmatmul.mubr.f32.gmra.mrb[0].mxu0 %v781
        %v849 = vpop.f32.mrb[0].mxu0
        %v850 = vadd.f32 0.0, %v849
        %v851 = vpop.f32.mrb[0].mxu0
        %852 = vdwg.mxu0
        %853 = vst.msk [vmem:[#allocation4] sm:$0xff] %vm684, %v850
        %854 = vrot.lane.b32.xlu0 %v654, 120
        %v855 = vpop.permute.xlu0 %854
        %856 = vrot.lane.b32.xlu0 %v655, 120
        %v857 = vpop.permute.xlu0 %856
        %858 = vrot.lane.b32.xlu0 %v656, 120
        %v859 = vpop.permute.xlu0 %858
        %v860 = vsel %vm684, %v855, 0
        %v862 = vsel %vm684, %v857, 0
        %v864 = vsel %vm684, %v859, 0
        %866 = vmatprep.subr.mxu0 0.0
        %867 = vmatpush1.xpose.msra.mxu0 %v862
        %868 = vmatprep.subr.mxu0 0.0
        %869 = vmatpush1.xpose.msra.mxu0 %v864
        %870 = vmatprep.subr.mxu0 0.0
        %871 = vmatpush1.xpose.msra.mxu0 0.0
        %872 = vmatprep.subr.mxu0 0.0
        %873 = vmatpush1.xpose.msra.mxu0 0.0
        %874 = vmatprep.subr.mxu0 0.0
        %875 = vmatpush1.xpose.msra.mxu0 0.0
        %876 = vmatprep.subr.mxu0 0.0
        %877 = vmatpush1.xpose.msra.mxu0 0.0
        %878 = vmatprep.subr.mxu0 0.0
        %879 = vmatpush1.xpose.msra.mxu0 0.0
        %880 = vmatprep.subr.mxu0 0.0
        %881 = vmatpush1.xpose.msra.mxu0 0.0
        %882 = vmatprep.subr.mxu0 0.0
        %883 = vmatpush1.xpose.msra.mxu0 0.0
        %884 = vmatprep.subr.mxu0 0.0
        %885 = vmatpush1.xpose.msra.mxu0 0.0
        %886 = vmatprep.subr.mxu0 0.0
        %887 = vmatpush1.xpose.msra.mxu0 0.0
        %888 = vmatprep.subr.mxu0 0.0
        %889 = vmatpush1.xpose.msra.mxu0 0.0
        %890 = vmatprep.subr.mxu0 0.0
        %891 = vmatpush1.xpose.msra.mxu0 0.0
        %892 = vmatprep.subr.mxu0 0.0
        %893 = vmatpush1.xpose.msra.mxu0 0.0
        %894 = vmatprep.subr.mxu0 0.0
        %895 = vmatpush1.xpose.msra.mxu0 0.0
        %896 = vmatprep.subr.mxu0 0.0
        %897 = vmatpush1.xpose.msra.mxu0 0.0
        %898 = vmatprep.subr.mxu0 0.0
        %899 = vmatpush1.xpose.msra.mxu0 0.0
        %900 = vmatprep.subr.mxu0 0.0
        %901 = vmatpush1.xpose.msra.mxu0 0.0
        %902 = vmatprep.subr.mxu0 0.0
        %903 = vmatpush1.xpose.msra.mxu0 0.0
        %904 = vmatprep.subr.mxu0 0.0
        %905 = vmatpush1.xpose.msra.mxu0 0.0
        %906 = vmatprep.subr.mxu0 0.0
        %907 = vmatpush1.xpose.msra.mxu0 0.0
        %908 = vmatprep.subr.mxu0 0.0
        %909 = vmatpush1.xpose.msra.mxu0 0.0
        %910 = vmatprep.subr.mxu0 0.0
        %911 = vmatpush1.xpose.msra.mxu0 0.0
        %912 = vmatprep.subr.mxu0 0.0
        %913 = vmatpush1.xpose.msra.mxu0 0.0
        %914 = vmatprep.subr.mxu0 0.0
        %915 = vmatpush1.xpose.msra.mxu0 0.0
        %916 = vmatprep.subr.mxu0 0.0
        %917 = vmatpush1.xpose.msra.mxu0 0.0
        %918 = vmatprep.subr.mxu0 0.0
        %919 = vmatpush1.xpose.msra.mxu0 0.0
        %920 = vmatprep.subr.mxu0 0.0
        %921 = vmatpush1.xpose.msra.mxu0 0.0
        %922 = vmatprep.subr.mxu0 0.0
        %923 = vmatpush1.xpose.msra.mxu0 0.0
        %924 = vmatprep.subr.mxu0 0.0
        %925 = vmatpush1.xpose.msra.mxu0 0.0
        %926 = vmatprep.subr.mxu0 0.0
        %927 = vmatpush1.xpose.msra.mxu0 0.0
        %928 = vmatprep.subr.mxu0 0.0
        %929 = vmatpush1.xpose.msra.mxu0 0.0
        %930 = vmatprep.mubr.f32.mxu0 0.0
        %931 = vmatmul.mubr.f32.gmra.mrb[0].mxu0 %v860
        %v932 = vpop.f32.mrb[0].mxu0
        %v933 = vadd.f32 0.0, %v932
        %v934 = vpop.f32.mrb[0].mxu0
        %935 = vdwg.mxu0
        %v936 = vsel %vm683, -inf, %v933
        %v937 = vsel %vm765, %v936, -inf
        %938 = vmax.xlane.f32.xlu0 %v937
        %v939 = vpop.xlane.xlu0 %938
        %v940 = vsub.f32 %v936, %v939
        %v941 = vmul.f32 %v940, 1.442695
        %v942 = vpow.pop %v941
        %v943 = vsel %vm765, %v942, 0.0
        %944 = vadd.xlane.f32.xlu0 %v943
        %v945 = vpop.xlane.xlu0 %944
        %v946 = vrcp.pop %v945
        %v947 = vmul.f32 %v942, %v946
        %s948 = scalar_lea.vmem %s451, 8 [#allocation14]
        %949 = vst.msk [vmem:[%s948] sm:$0xff] %vm765, %v947
        %vm950 = vcmp.ne.f32.partialorder %v947, %v947
        %v951 = vsel %vm950, 0.0, %v947
        %954 = vrot.lane.b32.xlu0 %v657, 120
        %v955 = vpop.permute.xlu0 %954
        %956 = vrot.lane.b32.xlu0 %v658, 120
        %v957 = vpop.permute.xlu0 %956
        %v961 = vsel %vm765, %v951, 0
        %963 = vmatprep.subr.mxu0 0.0
        %964 = vmatpush1.msra.mxu0 %v955
        %965 = vmatprep.subr.mxu0 0.0
        %966 = vmatpush1.msra.mxu0 %v957
        %967 = vmatprep.subr.mxu0 0.0
        %968 = vmatpush1.msra.mxu0 0.0
        %969 = vmatprep.subr.mxu0 0.0
        %970 = vmatpush1.msra.mxu0 0.0
        %971 = vmatprep.subr.mxu0 0.0
        %972 = vmatpush1.msra.mxu0 0.0
        %973 = vmatprep.subr.mxu0 0.0
        %974 = vmatpush1.msra.mxu0 0.0
        %975 = vmatprep.subr.mxu0 0.0
        %976 = vmatpush1.msra.mxu0 0.0
        %977 = vmatprep.subr.mxu0 0.0
        %978 = vmatpush1.msra.mxu0 0.0
        %979 = vmatprep.subr.mxu0 0.0
        %980 = vmatpush1.msra.mxu0 0.0
        %981 = vmatprep.subr.mxu0 0.0
        %982 = vmatpush1.msra.mxu0 0.0
        %983 = vmatprep.subr.mxu0 0.0
        %984 = vmatpush1.msra.mxu0 0.0
        %985 = vmatprep.subr.mxu0 0.0
        %986 = vmatpush1.msra.mxu0 0.0
        %987 = vmatprep.subr.mxu0 0.0
        %988 = vmatpush1.msra.mxu0 0.0
        %989 = vmatprep.subr.mxu0 0.0
        %990 = vmatpush1.msra.mxu0 0.0
        %991 = vmatprep.subr.mxu0 0.0
        %992 = vmatpush1.msra.mxu0 0.0
        %993 = vmatprep.subr.mxu0 0.0
        %994 = vmatpush1.msra.mxu0 0.0
        %995 = vmatprep.subr.mxu0 0.0
        %996 = vmatpush1.msra.mxu0 0.0
        %997 = vmatprep.subr.mxu0 0.0
        %998 = vmatpush1.msra.mxu0 0.0
        %999 = vmatprep.subr.mxu0 0.0
        %1000 = vmatpush1.msra.mxu0 0.0
        %1001 = vmatprep.subr.mxu0 0.0
        %1002 = vmatpush1.msra.mxu0 0.0
        %1003 = vmatprep.subr.mxu0 0.0
        %1004 = vmatpush1.msra.mxu0 0.0
        %1005 = vmatprep.subr.mxu0 0.0
        %1006 = vmatpush1.msra.mxu0 0.0
        %1007 = vmatprep.subr.mxu0 0.0
        %1008 = vmatpush1.msra.mxu0 0.0
        %1009 = vmatprep.subr.mxu0 0.0
        %1010 = vmatpush1.msra.mxu0 0.0
        %1011 = vmatprep.subr.mxu0 0.0
        %1012 = vmatpush1.msra.mxu0 0.0
        %1013 = vmatprep.subr.mxu0 0.0
        %1014 = vmatpush1.msra.mxu0 0.0
        %1015 = vmatprep.subr.mxu0 0.0
        %1016 = vmatpush1.msra.mxu0 0.0
        %1017 = vmatprep.subr.mxu0 0.0
        %1018 = vmatpush1.msra.mxu0 0.0
        %1019 = vmatprep.subr.mxu0 0.0
        %1020 = vmatpush1.msra.mxu0 0.0
        %1021 = vmatprep.subr.mxu0 0.0
        %1022 = vmatpush1.msra.mxu0 0.0
        %1023 = vmatprep.subr.mxu0 0.0
        %1024 = vmatpush1.msra.mxu0 0.0
        %1025 = vmatprep.subr.mxu0 0.0
        %1026 = vmatpush1.msra.mxu0 0.0
        %1027 = vmatprep.mubr.f32.mxu0 0.0
        %1028 = vmatmul.mubr.f32.gmra.mrb[0].mxu0 %v961
        %v1029 = vpop.f32.mrb[0].mxu0
        %v1030 = vadd.f32 0.0, %v1029
        %v1031 = vpop.f32.mrb[0].mxu0
        %1032 = vdwg.mxu0
        %1034 = vrot.lane.b32.xlu0 %v1030, 8
        %v1035 = vpop.permute.xlu0 %1034
        %vm1037 = vcmask 130112
        %1038 = vst.msk [vmem:[#allocation4] sm:$0xff] %vm1037, %v1035
        %1039 = vrot.lane.b32.xlu0 %v654, 112
        %v1040 = vpop.permute.xlu0 %1039
        %1041 = vrot.lane.b32.xlu0 %v655, 112
        %v1042 = vpop.permute.xlu0 %1041
        %1043 = vrot.lane.b32.xlu0 %v656, 112
        %v1044 = vpop.permute.xlu0 %1043
        %v1045 = vsel %vm684, %v1040, 0
        %v1047 = vsel %vm684, %v1042, 0
        %v1049 = vsel %vm684, %v1044, 0
        %1051 = vmatprep.subr.mxu0 0.0
        %1052 = vmatpush1.xpose.msra.mxu0 %v1047
        %1053 = vmatprep.subr.mxu0 0.0
        %1054 = vmatpush1.xpose.msra.mxu0 %v1049
        %1055 = vmatprep.subr.mxu0 0.0
        %1056 = vmatpush1.xpose.msra.mxu0 0.0
        %1057 = vmatprep.subr.mxu0 0.0
        %1058 = vmatpush1.xpose.msra.mxu0 0.0
        %1059 = vmatprep.subr.mxu0 0.0
        %1060 = vmatpush1.xpose.msra.mxu0 0.0
        %1061 = vmatprep.subr.mxu0 0.0
        %1062 = vmatpush1.xpose.msra.mxu0 0.0
        %1063 = vmatprep.subr.mxu0 0.0
        %1064 = vmatpush1.xpose.msra.mxu0 0.0
        %1065 = vmatprep.subr.mxu0 0.0
        %1066 = vmatpush1.xpose.msra.mxu0 0.0
        %1067 = vmatprep.subr.mxu0 0.0
        %1068 = vmatpush1.xpose.msra.mxu0 0.0
        %1069 = vmatprep.subr.mxu0 0.0
        %1070 = vmatpush1.xpose.msra.mxu0 0.0
        %1071 = vmatprep.subr.mxu0 0.0
        %1072 = vmatpush1.xpose.msra.mxu0 0.0
        %1073 = vmatprep.subr.mxu0 0.0
        %1074 = vmatpush1.xpose.msra.mxu0 0.0
        %1075 = vmatprep.subr.mxu0 0.0
        %1076 = vmatpush1.xpose.msra.mxu0 0.0
        %1077 = vmatprep.subr.mxu0 0.0
        %1078 = vmatpush1.xpose.msra.mxu0 0.0
        %1079 = vmatprep.subr.mxu0 0.0
        %1080 = vmatpush1.xpose.msra.mxu0 0.0
        %1081 = vmatprep.subr.mxu0 0.0
        %1082 = vmatpush1.xpose.msra.mxu0 0.0
        %1083 = vmatprep.subr.mxu0 0.0
        %1084 = vmatpush1.xpose.msra.mxu0 0.0
        %1085 = vmatprep.subr.mxu0 0.0
        %1086 = vmatpush1.xpose.msra.mxu0 0.0
        %1087 = vmatprep.subr.mxu0 0.0
        %1088 = vmatpush1.xpose.msra.mxu0 0.0
        %1089 = vmatprep.subr.mxu0 0.0
        %1090 = vmatpush1.xpose.msra.mxu0 0.0
        %1091 = vmatprep.subr.mxu0 0.0
        %1092 = vmatpush1.xpose.msra.mxu0 0.0
        %1093 = vmatprep.subr.mxu0 0.0
        %1094 = vmatpush1.xpose.msra.mxu0 0.0
        %1095 = vmatprep.subr.mxu0 0.0
        %1096 = vmatpush1.xpose.msra.mxu0 0.0
        %1097 = vmatprep.subr.mxu0 0.0
        %1098 = vmatpush1.xpose.msra.mxu0 0.0
        %1099 = vmatprep.subr.mxu0 0.0
        %1100 = vmatpush1.xpose.msra.mxu0 0.0
        %1101 = vmatprep.subr.mxu0 0.0
        %1102 = vmatpush1.xpose.msra.mxu0 0.0
        %1103 = vmatprep.subr.mxu0 0.0
        %1104 = vmatpush1.xpose.msra.mxu0 0.0
        %1105 = vmatprep.subr.mxu0 0.0
        %1106 = vmatpush1.xpose.msra.mxu0 0.0
        %1107 = vmatprep.subr.mxu0 0.0
        %1108 = vmatpush1.xpose.msra.mxu0 0.0
        %1109 = vmatprep.subr.mxu0 0.0
        %1110 = vmatpush1.xpose.msra.mxu0 0.0
        %1111 = vmatprep.subr.mxu0 0.0
        %1112 = vmatpush1.xpose.msra.mxu0 0.0
        %1113 = vmatprep.subr.mxu0 0.0
        %1114 = vmatpush1.xpose.msra.mxu0 0.0
        %1115 = vmatprep.mubr.f32.mxu0 0.0
        %1116 = vmatmul.mubr.f32.gmra.mrb[0].mxu0 %v1045
        %v1117 = vpop.f32.mrb[0].mxu0
        %v1118 = vadd.f32 0.0, %v1117
        %v1119 = vpop.f32.mrb[0].mxu0
        %1120 = vdwg.mxu0
        %v1121 = vsel %vm683, -inf, %v1118
        %v1122 = vsel %vm765, %v1121, -inf
        %1123 = vmax.xlane.f32.xlu0 %v1122
        %v1124 = vpop.xlane.xlu0 %1123
        %v1125 = vsub.f32 %v1121, %v1124
        %v1126 = vmul.f32 %v1125, 1.442695
        %v1127 = vpow.pop %v1126
        %v1128 = vsel %vm765, %v1127, 0.0
        %1129 = vadd.xlane.f32.xlu0 %v1128
        %v1130 = vpop.xlane.xlu0 %1129
        %v1131 = vrcp.pop %v1130
        %v1132 = vmul.f32 %v1127, %v1131
        %s1133 = scalar_lea.vmem %s451, 16 [#allocation14]
        %1134 = vst.msk [vmem:[%s1133] sm:$0xff] %vm765, %v1132
        %vm1135 = vcmp.ne.f32.partialorder %v1132, %v1132
        %v1136 = vsel %vm1135, 0.0, %v1132
        %1137 = vrot.lane.b32.xlu0 %v657, 112
        %v1138 = vpop.permute.xlu0 %1137
        %1139 = vrot.lane.b32.xlu0 %v658, 112
        %v1140 = vpop.permute.xlu0 %1139
        %v1144 = vsel %vm765, %v1136, 0
        %1146 = vmatprep.subr.mxu0 0.0
        %1147 = vmatpush1.msra.mxu0 %v1138
        %1148 = vmatprep.subr.mxu0 0.0
        %1149 = vmatpush1.msra.mxu0 %v1140
        %1150 = vmatprep.subr.mxu0 0.0
        %1151 = vmatpush1.msra.mxu0 0.0
        %1152 = vmatprep.subr.mxu0 0.0
        %1153 = vmatpush1.msra.mxu0 0.0
        %1154 = vmatprep.subr.mxu0 0.0
        %1155 = vmatpush1.msra.mxu0 0.0
        %1156 = vmatprep.subr.mxu0 0.0
        %1157 = vmatpush1.msra.mxu0 0.0
        %1158 = vmatprep.subr.mxu0 0.0
        %1159 = vmatpush1.msra.mxu0 0.0
        %1160 = vmatprep.subr.mxu0 0.0
        %1161 = vmatpush1.msra.mxu0 0.0
        %1162 = vmatprep.subr.mxu0 0.0
        %1163 = vmatpush1.msra.mxu0 0.0
        %1164 = vmatprep.subr.mxu0 0.0
        %1165 = vmatpush1.msra.mxu0 0.0
        %1166 = vmatprep.subr.mxu0 0.0
        %1167 = vmatpush1.msra.mxu0 0.0
        %1168 = vmatprep.subr.mxu0 0.0
        %1169 = vmatpush1.msra.mxu0 0.0
        %1170 = vmatprep.subr.mxu0 0.0
        %1171 = vmatpush1.msra.mxu0 0.0
        %1172 = vmatprep.subr.mxu0 0.0
        %1173 = vmatpush1.msra.mxu0 0.0
        %1174 = vmatprep.subr.mxu0 0.0
        %1175 = vmatpush1.msra.mxu0 0.0
        %1176 = vmatprep.subr.mxu0 0.0
        %1177 = vmatpush1.msra.mxu0 0.0
        %1178 = vmatprep.subr.mxu0 0.0
        %1179 = vmatpush1.msra.mxu0 0.0
        %1180 = vmatprep.subr.mxu0 0.0
        %1181 = vmatpush1.msra.mxu0 0.0
        %1182 = vmatprep.subr.mxu0 0.0
        %1183 = vmatpush1.msra.mxu0 0.0
        %1184 = vmatprep.subr.mxu0 0.0
        %1185 = vmatpush1.msra.mxu0 0.0
        %1186 = vmatprep.subr.mxu0 0.0
        %1187 = vmatpush1.msra.mxu0 0.0
        %1188 = vmatprep.subr.mxu0 0.0
        %1189 = vmatpush1.msra.mxu0 0.0
        %1190 = vmatprep.subr.mxu0 0.0
        %1191 = vmatpush1.msra.mxu0 0.0
        %1192 = vmatprep.subr.mxu0 0.0
        %1193 = vmatpush1.msra.mxu0 0.0
        %1194 = vmatprep.subr.mxu0 0.0
        %1195 = vmatpush1.msra.mxu0 0.0
        %1196 = vmatprep.subr.mxu0 0.0
        %1197 = vmatpush1.msra.mxu0 0.0
        %1198 = vmatprep.subr.mxu0 0.0
        %1199 = vmatpush1.msra.mxu0 0.0
        %1200 = vmatprep.subr.mxu0 0.0
        %1201 = vmatpush1.msra.mxu0 0.0
        %1202 = vmatprep.subr.mxu0 0.0
        %1203 = vmatpush1.msra.mxu0 0.0
        %1204 = vmatprep.subr.mxu0 0.0
        %1205 = vmatpush1.msra.mxu0 0.0
        %1206 = vmatprep.subr.mxu0 0.0
        %1207 = vmatpush1.msra.mxu0 0.0
        %1208 = vmatprep.subr.mxu0 0.0
        %1209 = vmatpush1.msra.mxu0 0.0
        %1210 = vmatprep.mubr.f32.mxu0 0.0
        %1211 = vmatmul.mubr.f32.gmra.mrb[0].mxu0 %v1144
        %v1212 = vpop.f32.mrb[0].mxu0
        %v1213 = vadd.f32 0.0, %v1212
        %v1214 = vpop.f32.mrb[0].mxu0
        %1215 = vdwg.mxu0
        %1217 = vrot.lane.b32.xlu0 %v1213, 16
        %v1218 = vpop.permute.xlu0 %1217
        %vm1220 = vcmask 195712
        %1221 = vst.msk [vmem:[#allocation4] sm:$0xff] %vm1220, %v1218
        %1222 = vrot.lane.b32.xlu0 %v654, 104
        %v1223 = vpop.permute.xlu0 %1222
        %1224 = vrot.lane.b32.xlu0 %v655, 104
        %v1225 = vpop.permute.xlu0 %1224
        %1226 = vrot.lane.b32.xlu0 %v656, 104
        %v1227 = vpop.permute.xlu0 %1226
        %v1228 = vsel %vm684, %v1223, 0
        %v1230 = vsel %vm684, %v1225, 0
        %v1232 = vsel %vm684, %v1227, 0
        %1234 = vmatprep.subr.mxu0 0.0
        %1235 = vmatpush1.xpose.msra.mxu0 %v1230
        %1236 = vmatprep.subr.mxu0 0.0
        %1237 = vmatpush1.xpose.msra.mxu0 %v1232
        %1238 = vmatprep.subr.mxu0 0.0
        %1239 = vmatpush1.xpose.msra.mxu0 0.0
        %1240 = vmatprep.subr.mxu0 0.0
        %1241 = vmatpush1.xpose.msra.mxu0 0.0
        %1242 = vmatprep.subr.mxu0 0.0
        %1243 = vmatpush1.xpose.msra.mxu0 0.0
        %1244 = vmatprep.subr.mxu0 0.0
        %1245 = vmatpush1.xpose.msra.mxu0 0.0
        %1246 = vmatprep.subr.mxu0 0.0
        %1247 = vmatpush1.xpose.msra.mxu0 0.0
        %1248 = vmatprep.subr.mxu0 0.0
        %1249 = vmatpush1.xpose.msra.mxu0 0.0
        %1250 = vmatprep.subr.mxu0 0.0
        %1251 = vmatpush1.xpose.msra.mxu0 0.0
        %1252 = vmatprep.subr.mxu0 0.0
        %1253 = vmatpush1.xpose.msra.mxu0 0.0
        %1254 = vmatprep.subr.mxu0 0.0
        %1255 = vmatpush1.xpose.msra.mxu0 0.0
        %1256 = vmatprep.subr.mxu0 0.0
        %1257 = vmatpush1.xpose.msra.mxu0 0.0
        %1258 = vmatprep.subr.mxu0 0.0
        %1259 = vmatpush1.xpose.msra.mxu0 0.0
        %1260 = vmatprep.subr.mxu0 0.0
        %1261 = vmatpush1.xpose.msra.mxu0 0.0
        %1262 = vmatprep.subr.mxu0 0.0
        %1263 = vmatpush1.xpose.msra.mxu0 0.0
        %1264 = vmatprep.subr.mxu0 0.0
        %1265 = vmatpush1.xpose.msra.mxu0 0.0
        %1266 = vmatprep.subr.mxu0 0.0
        %1267 = vmatpush1.xpose.msra.mxu0 0.0
        %1268 = vmatprep.subr.mxu0 0.0
        %1269 = vmatpush1.xpose.msra.mxu0 0.0
        %1270 = vmatprep.subr.mxu0 0.0
        %1271 = vmatpush1.xpose.msra.mxu0 0.0
        %1272 = vmatprep.subr.mxu0 0.0
        %1273 = vmatpush1.xpose.msra.mxu0 0.0
        %1274 = vmatprep.subr.mxu0 0.0
        %1275 = vmatpush1.xpose.msra.mxu0 0.0
        %1276 = vmatprep.subr.mxu0 0.0
        %1277 = vmatpush1.xpose.msra.mxu0 0.0
        %1278 = vmatprep.subr.mxu0 0.0
        %1279 = vmatpush1.xpose.msra.mxu0 0.0
        %1280 = vmatprep.subr.mxu0 0.0
        %1281 = vmatpush1.xpose.msra.mxu0 0.0
        %1282 = vmatprep.subr.mxu0 0.0
        %1283 = vmatpush1.xpose.msra.mxu0 0.0
        %1284 = vmatprep.subr.mxu0 0.0
        %1285 = vmatpush1.xpose.msra.mxu0 0.0
        %1286 = vmatprep.subr.mxu0 0.0
        %1287 = vmatpush1.xpose.msra.mxu0 0.0
        %1288 = vmatprep.subr.mxu0 0.0
        %1289 = vmatpush1.xpose.msra.mxu0 0.0
        %1290 = vmatprep.subr.mxu0 0.0
        %1291 = vmatpush1.xpose.msra.mxu0 0.0
        %1292 = vmatprep.subr.mxu0 0.0
        %1293 = vmatpush1.xpose.msra.mxu0 0.0
        %1294 = vmatprep.subr.mxu0 0.0
        %1295 = vmatpush1.xpose.msra.mxu0 0.0
        %1296 = vmatprep.subr.mxu0 0.0
        %1297 = vmatpush1.xpose.msra.mxu0 0.0
        %1298 = vmatprep.mubr.f32.mxu0 0.0
        %1299 = vmatmul.mubr.f32.gmra.mrb[0].mxu0 %v1228
        %v1300 = vpop.f32.mrb[0].mxu0
        %v1301 = vadd.f32 0.0, %v1300
        %v1302 = vpop.f32.mrb[0].mxu0
        %1303 = vdwg.mxu0
        %v1304 = vsel %vm683, -inf, %v1301
        %v1305 = vsel %vm765, %v1304, -inf
        %1306 = vmax.xlane.f32.xlu0 %v1305
        %v1307 = vpop.xlane.xlu0 %1306
        %v1308 = vsub.f32 %v1304, %v1307
        %v1309 = vmul.f32 %v1308, 1.442695
        %v1310 = vpow.pop %v1309
        %v1311 = vsel %vm765, %v1310, 0.0
        %1312 = vadd.xlane.f32.xlu0 %v1311
        %v1313 = vpop.xlane.xlu0 %1312
        %v1314 = vrcp.pop %v1313
        %v1315 = vmul.f32 %v1310, %v1314
        %s1316 = scalar_lea.vmem %s451, 24 [#allocation14]
        %1317 = vst.msk [vmem:[%s1316] sm:$0xff] %vm765, %v1315
        %vm1318 = vcmp.ne.f32.partialorder %v1315, %v1315
        %v1319 = vsel %vm1318, 0.0, %v1315
        %1320 = vrot.lane.b32.xlu0 %v657, 104
        %v1321 = vpop.permute.xlu0 %1320
        %1322 = vrot.lane.b32.xlu0 %v658, 104
        %v1323 = vpop.permute.xlu0 %1322
        %v1327 = vsel %vm765, %v1319, 0
        %1329 = vmatprep.subr.mxu0 0.0
        %1330 = vmatpush1.msra.mxu0 %v1321
        %1331 = vmatprep.subr.mxu0 0.0
        %1332 = vmatpush1.msra.mxu0 %v1323
        %1333 = vmatprep.subr.mxu0 0.0
        %1334 = vmatpush1.msra.mxu0 0.0
        %1335 = vmatprep.subr.mxu0 0.0
        %1336 = vmatpush1.msra.mxu0 0.0
        %1337 = vmatprep.subr.mxu0 0.0
        %1338 = vmatpush1.msra.mxu0 0.0
        %1339 = vmatprep.subr.mxu0 0.0
        %1340 = vmatpush1.msra.mxu0 0.0
        %1341 = vmatprep.subr.mxu0 0.0
        %1342 = vmatpush1.msra.mxu0 0.0
        %1343 = vmatprep.subr.mxu0 0.0
        %1344 = vmatpush1.msra.mxu0 0.0
        %1345 = vmatprep.subr.mxu0 0.0
        %1346 = vmatpush1.msra.mxu0 0.0
        %1347 = vmatprep.subr.mxu0 0.0
        %1348 = vmatpush1.msra.mxu0 0.0
        %1349 = vmatprep.subr.mxu0 0.0
        %1350 = vmatpush1.msra.mxu0 0.0
        %1351 = vmatprep.subr.mxu0 0.0
        %1352 = vmatpush1.msra.mxu0 0.0
        %1353 = vmatprep.subr.mxu0 0.0
        %1354 = vmatpush1.msra.mxu0 0.0
        %1355 = vmatprep.subr.mxu0 0.0
        %1356 = vmatpush1.msra.mxu0 0.0
        %1357 = vmatprep.subr.mxu0 0.0
        %1358 = vmatpush1.msra.mxu0 0.0
        %1359 = vmatprep.subr.mxu0 0.0
        %1360 = vmatpush1.msra.mxu0 0.0
        %1361 = vmatprep.subr.mxu0 0.0
        %1362 = vmatpush1.msra.mxu0 0.0
        %1363 = vmatprep.subr.mxu0 0.0
        %1364 = vmatpush1.msra.mxu0 0.0
        %1365 = vmatprep.subr.mxu0 0.0
        %1366 = vmatpush1.msra.mxu0 0.0
        %1367 = vmatprep.subr.mxu0 0.0
        %1368 = vmatpush1.msra.mxu0 0.0
        %1369 = vmatprep.subr.mxu0 0.0
        %1370 = vmatpush1.msra.mxu0 0.0
        %1371 = vmatprep.subr.mxu0 0.0
        %1372 = vmatpush1.msra.mxu0 0.0
        %1373 = vmatprep.subr.mxu0 0.0
        %1374 = vmatpush1.msra.mxu0 0.0
        %1375 = vmatprep.subr.mxu0 0.0
        %1376 = vmatpush1.msra.mxu0 0.0
        %1377 = vmatprep.subr.mxu0 0.0
        %1378 = vmatpush1.msra.mxu0 0.0
        %1379 = vmatprep.subr.mxu0 0.0
        %1380 = vmatpush1.msra.mxu0 0.0
        %1381 = vmatprep.subr.mxu0 0.0
        %1382 = vmatpush1.msra.mxu0 0.0
        %1383 = vmatprep.subr.mxu0 0.0
        %1384 = vmatpush1.msra.mxu0 0.0
        %1385 = vmatprep.subr.mxu0 0.0
        %1386 = vmatpush1.msra.mxu0 0.0
        %1387 = vmatprep.subr.mxu0 0.0
        %1388 = vmatpush1.msra.mxu0 0.0
        %1389 = vmatprep.subr.mxu0 0.0
        %1390 = vmatpush1.msra.mxu0 0.0
        %1391 = vmatprep.subr.mxu0 0.0
        %1392 = vmatpush1.msra.mxu0 0.0
        %1393 = vmatprep.mubr.f32.mxu0 0.0
        %1394 = vmatmul.mubr.f32.gmra.mrb[0].mxu0 %v1327
        %v1395 = vpop.f32.mrb[0].mxu0
        %v1396 = vadd.f32 0.0, %v1395
        %v1397 = vpop.f32.mrb[0].mxu0
        %1398 = vdwg.mxu0
        %1400 = vrot.lane.b32.xlu0 %v1396, 24
        %v1401 = vpop.permute.xlu0 %1400
        %vm1403 = vcmask 261312
        %1404 = vst.msk [vmem:[#allocation4] sm:$0xff] %vm1403, %v1401
        %v1405 = vld [vmem:[#allocation4] sm:$0xff]
        %v1406 = vld [vmem:[#allocation11] sm:$0xff]
        %v1407 = vld [vmem:[#allocation11 + $0x8] sm:$0xff]
        %v1408 = vld [vmem:[#allocation11 + $0x10] sm:$0xff]
        %v1409 = vld [vmem:[#allocation11 + $0x18] sm:$0xff]
        %v1411 = vsel %vm580, %v1405, 0
        %1413 = vmatprep.subr.mxu0 0.0
        %1414 = vmatpush1.msra.mxu0 %v1406
        %1415 = vmatprep.subr.mxu0 0.0
        %1416 = vmatpush1.msra.mxu0 %v1407
        %1417 = vmatprep.subr.mxu0 0.0
        %1418 = vmatpush1.msra.mxu0 %v1408
        %1419 = vmatprep.subr.mxu0 0.0
        %1420 = vmatpush1.msra.mxu0 %v1409
        %1421 = vmatprep.subr.mxu0 0.0
        %1422 = vmatpush1.msra.mxu0 0.0
        %1423 = vmatprep.subr.mxu0 0.0
        %1424 = vmatpush1.msra.mxu0 0.0
        %1425 = vmatprep.subr.mxu0 0.0
        %1426 = vmatpush1.msra.mxu0 0.0
        %1427 = vmatprep.subr.mxu0 0.0
        %1428 = vmatpush1.msra.mxu0 0.0
        %1429 = vmatprep.subr.mxu0 0.0
        %1430 = vmatpush1.msra.mxu0 0.0
        %1431 = vmatprep.subr.mxu0 0.0
        %1432 = vmatpush1.msra.mxu0 0.0
        %1433 = vmatprep.subr.mxu0 0.0
        %1434 = vmatpush1.msra.mxu0 0.0
        %1435 = vmatprep.subr.mxu0 0.0
        %1436 = vmatpush1.msra.mxu0 0.0
        %1437 = vmatprep.subr.mxu0 0.0
        %1438 = vmatpush1.msra.mxu0 0.0
        %1439 = vmatprep.subr.mxu0 0.0
        %1440 = vmatpush1.msra.mxu0 0.0
        %1441 = vmatprep.subr.mxu0 0.0
        %1442 = vmatpush1.msra.mxu0 0.0
        %1443 = vmatprep.subr.mxu0 0.0
        %1444 = vmatpush1.msra.mxu0 0.0
        %1445 = vmatprep.subr.mxu0 0.0
        %1446 = vmatpush1.msra.mxu0 0.0
        %1447 = vmatprep.subr.mxu0 0.0
        %1448 = vmatpush1.msra.mxu0 0.0
        %1449 = vmatprep.subr.mxu0 0.0
        %1450 = vmatpush1.msra.mxu0 0.0
        %1451 = vmatprep.subr.mxu0 0.0
        %1452 = vmatpush1.msra.mxu0 0.0
        %1453 = vmatprep.subr.mxu0 0.0
        %1454 = vmatpush1.msra.mxu0 0.0
        %1455 = vmatprep.subr.mxu0 0.0
        %1456 = vmatpush1.msra.mxu0 0.0
        %1457 = vmatprep.subr.mxu0 0.0
        %1458 = vmatpush1.msra.mxu0 0.0
        %1459 = vmatprep.subr.mxu0 0.0
        %1460 = vmatpush1.msra.mxu0 0.0
        %1461 = vmatprep.subr.mxu0 0.0
        %1462 = vmatpush1.msra.mxu0 0.0
        %1463 = vmatprep.subr.mxu0 0.0
        %1464 = vmatpush1.msra.mxu0 0.0
        %1465 = vmatprep.subr.mxu0 0.0
        %1466 = vmatpush1.msra.mxu0 0.0
        %1467 = vmatprep.subr.mxu0 0.0
        %1468 = vmatpush1.msra.mxu0 0.0
        %1469 = vmatprep.subr.mxu0 0.0
        %1470 = vmatpush1.msra.mxu0 0.0
        %1471 = vmatprep.subr.mxu0 0.0
        %1472 = vmatpush1.msra.mxu0 0.0
        %1473 = vmatprep.subr.mxu0 0.0
        %1474 = vmatpush1.msra.mxu0 0.0
        %1475 = vmatprep.subr.mxu0 0.0
        %1476 = vmatpush1.msra.mxu0 0.0
        %1477 = vmatprep.mubr.f32.mxu0 0.0
        %1478 = vmatmul.mubr.f32.gmra.mrb[0].mxu0 %v1411
        %v1479 = vpop.f32.mrb[0].mxu0
        %v1480 = vadd.f32 0.0, %v1479
        %v1481 = vpop.f32.mrb[0].mxu0
        %1482 = vdwg.mxu0
        %1483 = vst.msk [vmem:[%s444] sm:$0xff] %vm580, %v1480
        %s1484 = sand.u32 %s224, 1
        %s1485 = scalar_lea.sflag [#allocation7], %s1484
        %s1486 = sand.u32 %s224, 1
        %s1487 = smul.addr %s1486, 8
        %s1488 = scalar_lea.vmem [#allocation13], %s1487
        %s1489 = sand.u32 %s252, 1
        %s1490 = scalar_lea.sflag [#allocation15], %s1489
        %s1491 = sand.u32 %s252, 1
        %s1492 = smul.addr %s1491, 32
        %s1493 = scalar_lea.vmem [#allocation14], %s1492
        // Predicated region
        $region69: #{tpu_custom_call.1} parent=47 // pred_check
          %p1494 = pneg %p234
        $region70: #{tpu_custom_call.1} parent=47 // pred_check_branch
          %1496 = sbr.rel (%p1494) target = $region72
        $region71: #{tpu_custom_call.1} parent=47 // pred_region
          %s1498 = ssub.s32 128, 128
          %1499 = vsyncadd %s1485, %s1498
          %s1500 = smul.addr %s35, 2
          %s1501 = sadd.s32 %s36, %s1500
          %s1502 = smul.addr %s1501, 128
          %s1503 = scalar_lea.hbm %s7, %s1502
          %s1505 = sshll.u32 %s1488, 4
          %s1506 = int_to_ptr.vmem [resolvable:$true] %s1505
          %1508 = dma.vmem_to_hbm [thread:$0]  %s1506, 128, %s1503, %s1485
        $region72: #{tpu_custom_call.1} parent=47 // pred_fallthru
          _
        // Predicated region
        $region73: #{tpu_custom_call.1} parent=47 // pred_check
          %p1509 = pneg %p262
        $region74: #{tpu_custom_call.1} parent=47 // pred_check_branch
          %1511 = sbr.rel (%p1509) target = $region76
        $region75: #{tpu_custom_call.1} parent=47 // pred_region
          %s1513 = ssub.s32 512, 512
          %1514 = vsyncadd %s1490, %s1513
          %s1515 = smul.addr %s35, 8
          %s1516 = sadd.s32 %s36, %s1515
          %s1517 = smul.addr %s1516, 128
          %s1518 = scalar_lea.hbm %s8, %s1517
          %s1519 = sshll.u32 %s1493, 4
          %s1520 = int_to_ptr.vmem [resolvable:$true] %s1519
          %1525 = dma.vmem_to_hbm [thread:$0]  %s1520, 512, %s1518, %s1490, 128, 256, 8
        $region76: #{tpu_custom_call.1} parent=47 // pred_fallthru
          _
      $region48: #{tpu_custom_call.1} parent=5 // pred_fallthru
        _
      %p1526 = scmp.le.s32.totalorder 2, %s26
      // Predicated region
      $region77: #{tpu_custom_call.1} parent=5 // pred_check
        %p1527 = pneg %p1526
      $region78: #{tpu_custom_call.1} parent=5 // pred_check_branch
        %1529 = sbr.rel (%p1527) target = $region80
      $region79: #{tpu_custom_call.1} parent=5 // pred_region
        %s1530 = ssub.s32 %s26, 2
        // Predicated region
        $region81: #{tpu_custom_call.1} parent=79 // pred_check
          %p1531 = pneg %p240
        $region82: #{tpu_custom_call.1} parent=79 // pred_check_branch
          %1533 = sbr.rel (%p1531) target = $region84
        $region83: #{tpu_custom_call.1} parent=79 // pred_region
          %s1534 = sand.u32 %s225, 1
          %s1535 = scalar_lea.sflag [#allocation7], %s1534
          %s1536 = sand.u32 %s225, 1
          %s1537 = smul.addr %s1536, 8
          %s1538 = scalar_lea.vmem [#allocation13], %s1537
          %1539 = dma.done %s1535, 128
        $region84: #{tpu_custom_call.1} parent=79 // pred_fallthru
          _
        // Predicated region
        $region85: #{tpu_custom_call.1} parent=79 // pred_check
          %p1540 = pneg %p268
        $region86: #{tpu_custom_call.1} parent=79 // pred_check_branch
          %1542 = sbr.rel (%p1540) target = $region88
        $region87: #{tpu_custom_call.1} parent=79 // pred_region
          %s1543 = sand.u32 %s253, 1
          %s1544 = scalar_lea.sflag [#allocation15], %s1543
          %s1545 = sand.u32 %s253, 1
          %s1546 = smul.addr %s1545, 32
          %s1547 = scalar_lea.vmem [#allocation14], %s1546
          %1548 = dma.done %s1544, 512
        $region88: #{tpu_custom_call.1} parent=79 // pred_fallthru
          _
      $region80: #{tpu_custom_call.1} parent=5 // pred_fallthru
        _
    $region6: #{tpu_custom_call.1} parent=1 // loop_footer
      %s30 = sadd.s32 1, %s26
    $region7: #{tpu_custom_call.1} parent=1 // loop_footer_branch
      %25 = sbr.rel target = $region3
    $region8: #{tpu_custom_call.1} parent=1 // loop_exit
      _
    %1549 = vsyncpa [#allocation6], 1
    %s1550 = scalar_lea.sflag [#allocation6], 1
    %1551 = vsyncpa %s1550, 1
    %1552 = vsyncpa [#allocation9], 1
    %1553 = vsyncpa [#allocation12], 1
    %1554 = vsyncpa [#allocation7], 1
    %s1555 = scalar_lea.sflag [#allocation7], 1
    %1556 = vsyncpa %s1555, 1
    %1557 = vsyncpa [#allocation15], 1
    %s1558 = scalar_lea.sflag [#allocation15], 1
    %1559 = vsyncpa %s1558, 1

</llo_original>
